<compile_context>
chip_gen: v7x
topology: tpu7x:2x2x1
jax: 0.10.0
libtpu: 0.0.40
codegen_flags: <defaults>
</compile_context>

<pallas_src>
import functools

import jax
import jax.numpy as jnp
from jax.experimental import pallas as pl
from jax.experimental.pallas import tpu as pltpu


def _round_up(n, m):
    return ((n + m - 1) // m) * m


def _ppo_kernel(
    x_ref,
    w1_ref, b1_ref,
    w2_ref, b2_ref,
    w3_ref, b3_ref,
    w4_ref, b4_ref,
    wh_ref, bh_ref,
    out_ref,
    *, output_dim,
):
    """Actor-critic forward for one batch tile.

    5 MXU matmuls (bf16 in, f32 acc), f32 tanh on VPU/EUP, masked lane-axis
    softmax, single lane-dense output store.
    """
    x = x_ref[...]  # bf16 (tile, input_dim)

    def layer(h_bf16, w_ref, b_ref):
        acc = jnp.dot(h_bf16, w_ref[...], preferred_element_type=jnp.float32)
        return jnp.tanh(acc + b_ref[...]).astype(jnp.bfloat16)

    h = layer(x, w1_ref, b1_ref)
    h = layer(h, w2_ref, b2_ref)
    h = layer(h, w3_ref, b3_ref)
    h = layer(h, w4_ref, b4_ref)

    # Fused actor + critic head: one lane-dense MXU matmul.
    head = jnp.dot(h, wh_ref[...], preferred_element_type=jnp.float32) + bh_ref[...]

    lane = jax.lax.broadcasted_iota(jnp.int32, head.shape, dimension=1)
    is_actor = lane < output_dim

    # Softmax over actor lanes only (padding / value lanes masked to -inf-ish).
    logits = jnp.where(is_actor, head, jnp.float32(-1e30))
    m = jnp.max(logits, axis=-1, keepdims=True)
    e = jnp.exp(logits - m)
    s = jnp.sum(e, axis=-1, keepdims=True)
    probs = e * pl.reciprocal(s, approx=False)  # EUP reciprocal, no vector divide

    # Lanes [0, out_dim): probs. Lane out_dim: critic value. Rest: zeros.
    out_ref[...] = jnp.where(is_actor, probs, head).astype(out_ref.dtype)


@functools.partial(jax.jit, static_argnames=("batch_tile",))
def ppo_actor_critic_forward(x, params, *, batch_tile=256):
    """Pallas-call wrapper. x: (B, input_dim) float32. Returns (probs, value)."""
    B, input_dim = x.shape
    (w1, b1), (w2, b2), (w3, b3), (w4, b4), (wa, ba), (wc, bc) = params
    hidden_last = wa.shape[0]          # 64
    output_dim = wa.shape[1]

    # --- fuse actor + critic heads into one lane-dense (64, 128k) weight ---
    head_pad = _round_up(output_dim + 1, 128)
    w_head = jnp.zeros((hidden_last, head_pad), jnp.float32)
    w_head = w_head.at[:, :output_dim].set(wa)
    w_head = w_head.at[:, output_dim:output_dim + 1].set(wc)
    b_head = jnp.zeros((1, head_pad), jnp.float32)
    b_head = b_head.at[:, :output_dim].set(ba)
    b_head = b_head.at[:, output_dim:output_dim + 1].set(bc)

    # --- bf16 matmul operands, f32 biases ---
    x_bf = x.astype(jnp.bfloat16)
    ws = [w.astype(jnp.bfloat16) for w in (w1, w2, w3, w4, w_head)]
    bs = [b.astype(jnp.float32) for b in (b1, b2, b3, b4, b_head)]

    # --- batch tiling with padding (bf16 x => sublane multiple of 16) ---
    tile = min(_round_up(batch_tile, 16), _round_up(B, 16))
    B_pad = _round_up(B, tile)
    if B_pad != B:
        x_bf = jnp.pad(x_bf, ((0, B_pad - B), (0, 0)))

    grid = (B_pad // tile,)

    def whole(arr):
        # Whole-array block, constant index -> stays resident in VMEM.
        return pl.BlockSpec(arr.shape, lambda i: (0,) * arr.ndim)

    in_specs = [pl.BlockSpec((tile, input_dim), lambda i: (i, 0))]
    for w, b in zip(ws, bs):
        in_specs += [whole(w), whole(b)]

    out_specs = pl.BlockSpec((tile, head_pad), lambda i: (i, 0))
    out_shape = jax.ShapeDtypeStruct((B_pad, head_pad), jnp.float32)

    fused = pl.pallas_call(
        functools.partial(_ppo_kernel, output_dim=output_dim),
        out_shape=out_shape,
        grid_spec=pltpu.PrefetchScalarGridSpec(
            num_scalar_prefetch=0,
            grid=grid,
            in_specs=in_specs,
            out_specs=out_specs,
        ),
        compiler_params=pltpu.CompilerParams(
            dimension_semantics=("parallel",),
            vmem_limit_bytes=32 * 1024 * 1024,
        ),
    )(x_bf, ws[0], bs[0], ws[1], bs[1], ws[2], bs[2], ws[3], bs[3], ws[4], bs[4])

    fused = fused[:B]
    probs = fused[:, :output_dim]
    value = fused[:, output_dim:output_dim + 1]
    return probs, value


def init_params(key, input_dim, output_dim):
    """Deterministic synthetic init (torch.nn.Linear-style uniform fan-in).

    Weights stored as (in_features, out_features); biases as (1, out_features).
    """
    dims = [(input_dim, 1024), (1024, 512), (512, 256), (256, 64),
            (64, output_dim), (64, 1)]
    params = []
    for i, (fan_in, fan_out) in enumerate(dims):
        kw, kb = jax.random.split(jax.random.fold_in(key, i))
        bound = 1.0 / (fan_in ** 0.5)
        w = jax.random.uniform(kw, (fan_in, fan_out), jnp.float32, -bound, bound)
        b = jax.random.uniform(kb, (1, fan_out), jnp.float32, -bound, bound)
        params.append((w, b))
    return params


def reference_forward(x, params):
    """Pure-JAX f32 reference of the PyTorch module semantics."""
    (w1, b1), (w2, b2), (w3, b3), (w4, b4), (wa, ba), (wc, bc) = params
    h = jnp.tanh(x @ w1 + b1)
    h = jnp.tanh(h @ w2 + b2)
    h = jnp.tanh(h @ w3 + b3)
    h = jnp.tanh(h @ w4 + b4)
    probs = jax.nn.softmax(h @ wa + ba, axis=-1)
    value = h @ wc + bc
    return probs, value


if __name__ == "__main__":
    key = jax.random.PRNGKey(0)
    input_dim, output_dim, batch = 32, 8, 50

    kx, kp = jax.random.split(key)
    x = jax.random.normal(kx, (batch, input_dim), jnp.float32)
    params = init_params(kp, input_dim, output_dim)

    # Small tile here just to exercise the multi-step grid + batch-padding
    # path; production default is batch_tile=256 (MXU-filling tiles).
    probs, value = ppo_actor_critic_forward(x, params, batch_tile=16)
    jax.block_until_ready((probs, value))

    ref_probs, ref_value = reference_forward(x, params)
    assert probs.shape == (batch, output_dim)
    assert value.shape == (batch, 1)
    assert jnp.allclose(jnp.sum(probs, axis=-1), 1.0, atol=1e-3)
    # bf16 matmul inputs with f32 accumulation -> loosened tolerance vs f32 ref.
    assert jnp.allclose(probs, ref_probs, atol=3e-2, rtol=3e-2)
    assert jnp.allclose(value, ref_value, atol=3e-2, rtol=3e-2)

    print("KERNEL_OK")
</pallas_src>

<mosaic_0001>
module attributes {stable_mosaic.version = 11 : i64} {
  func.func @_ppo_kernel(%arg0: i32, %arg1: memref<16x32xbf16, #tpu.memory_space<vmem>>, %arg2: memref<32x1024xbf16, #tpu.memory_space<vmem>>, %arg3: memref<1x1024xf32, #tpu.memory_space<vmem>>, %arg4: memref<1024x512xbf16, #tpu.memory_space<vmem>>, %arg5: memref<1x512xf32, #tpu.memory_space<vmem>>, %arg6: memref<512x256xbf16, #tpu.memory_space<vmem>>, %arg7: memref<1x256xf32, #tpu.memory_space<vmem>>, %arg8: memref<256x64xbf16, #tpu.memory_space<vmem>>, %arg9: memref<1x64xf32, #tpu.memory_space<vmem>>, %arg10: memref<64x128xbf16, #tpu.memory_space<vmem>>, %arg11: memref<1x128xf32, #tpu.memory_space<vmem>>, %arg12: memref<16x128xf32, #tpu.memory_space<vmem>>) attributes {dimension_semantics = [#tpu.dimension_semantics<parallel>], iteration_bounds = array<i64: 4>, scalar_prefetch = 0 : i64, scratch_operands = 0 : i64, tpu.core_type = #tpu.core_type<tc>, window_params = [{transform_indices = @transform_0, window_bounds = array<i64: 16, 32>}, {pipeline_mode = #tpu.pipeline_mode<synchronous>, transform_indices = @transform_1, window_bounds = array<i64: 32, 1024>}, {pipeline_mode = #tpu.pipeline_mode<synchronous>, transform_indices = @transform_2, window_bounds = array<i64: 1, 1024>}, {pipeline_mode = #tpu.pipeline_mode<synchronous>, transform_indices = @transform_3, window_bounds = array<i64: 1024, 512>}, {pipeline_mode = #tpu.pipeline_mode<synchronous>, transform_indices = @transform_4, window_bounds = array<i64: 1, 512>}, {pipeline_mode = #tpu.pipeline_mode<synchronous>, transform_indices = @transform_5, window_bounds = array<i64: 512, 256>}, {pipeline_mode = #tpu.pipeline_mode<synchronous>, transform_indices = @transform_6, window_bounds = array<i64: 1, 256>}, {pipeline_mode = #tpu.pipeline_mode<synchronous>, transform_indices = @transform_7, window_bounds = array<i64: 256, 64>}, {pipeline_mode = #tpu.pipeline_mode<synchronous>, transform_indices = @transform_8, window_bounds = array<i64: 1, 64>}, {pipeline_mode = #tpu.pipeline_mode<synchronous>, transform_indices = @transform_9, window_bounds = array<i64: 64, 128>}, {pipeline_mode = #tpu.pipeline_mode<synchronous>, transform_indices = @transform_10, window_bounds = array<i64: 1, 128>}, {transform_indices = @transform_11, window_bounds = array<i64: 16, 128>}]} {
    %c0 = arith.constant 0 : index
    %c0_0 = arith.constant 0 : index
    %0 = vector.load %arg1[%c0, %c0_0] : memref<16x32xbf16, #tpu.memory_space<vmem>>, vector<16x32xbf16>
    %c0_1 = arith.constant 0 : index
    %c0_2 = arith.constant 0 : index
    %1 = vector.load %arg2[%c0_1, %c0_2] : memref<32x1024xbf16, #tpu.memory_space<vmem>>, vector<32x1024xbf16>
    %cst = arith.constant dense<0.000000e+00> : vector<16x1024xf32>
    %2 = tpu.matmul %0, %1, %cst {dimension_numbers = #tpu.dot_dimension_numbers<[1], [0], [0], [1], [0, 0, 1, 1], [], []>} : vector<16x32xbf16>, vector<32x1024xbf16>, vector<16x1024xf32> -> vector<16x1024xf32>
    %c0_3 = arith.constant 0 : index
    %c0_4 = arith.constant 0 : index
    %3 = vector.load %arg3[%c0_3, %c0_4] : memref<1x1024xf32, #tpu.memory_space<vmem>>, vector<1x1024xf32>
    %4 = vector.broadcast %3 : vector<1x1024xf32> to vector<16x1024xf32>
    %5 = arith.addf %2, %4 : vector<16x1024xf32>
    %6 = math.tanh %5 : vector<16x1024xf32>
    %7 = arith.truncf %6 : vector<16x1024xf32> to vector<16x1024xbf16>
    %c0_5 = arith.constant 0 : index
    %c0_6 = arith.constant 0 : index
    %8 = vector.load %arg4[%c0_5, %c0_6] : memref<1024x512xbf16, #tpu.memory_space<vmem>>, vector<1024x512xbf16>
    %cst_7 = arith.constant dense<0.000000e+00> : vector<16x512xf32>
    %9 = tpu.matmul %7, %8, %cst_7 {dimension_numbers = #tpu.dot_dimension_numbers<[1], [0], [0], [1], [0, 0, 1, 1], [], []>} : vector<16x1024xbf16>, vector<1024x512xbf16>, vector<16x512xf32> -> vector<16x512xf32>
    %c0_8 = arith.constant 0 : index
    %c0_9 = arith.constant 0 : index
    %10 = vector.load %arg5[%c0_8, %c0_9] : memref<1x512xf32, #tpu.memory_space<vmem>>, vector<1x512xf32>
    %11 = vector.broadcast %10 : vector<1x512xf32> to vector<16x512xf32>
    %12 = arith.addf %9, %11 : vector<16x512xf32>
    %13 = math.tanh %12 : vector<16x512xf32>
    %14 = arith.truncf %13 : vector<16x512xf32> to vector<16x512xbf16>
    %c0_10 = arith.constant 0 : index
    %c0_11 = arith.constant 0 : index
    %15 = vector.load %arg6[%c0_10, %c0_11] : memref<512x256xbf16, #tpu.memory_space<vmem>>, vector<512x256xbf16>
    %cst_12 = arith.constant dense<0.000000e+00> : vector<16x256xf32>
    %16 = tpu.matmul %14, %15, %cst_12 {dimension_numbers = #tpu.dot_dimension_numbers<[1], [0], [0], [1], [0, 0, 1, 1], [], []>} : vector<16x512xbf16>, vector<512x256xbf16>, vector<16x256xf32> -> vector<16x256xf32>
    %c0_13 = arith.constant 0 : index
    %c0_14 = arith.constant 0 : index
    %17 = vector.load %arg7[%c0_13, %c0_14] : memref<1x256xf32, #tpu.memory_space<vmem>>, vector<1x256xf32>
    %18 = vector.broadcast %17 : vector<1x256xf32> to vector<16x256xf32>
    %19 = arith.addf %16, %18 : vector<16x256xf32>
    %20 = math.tanh %19 : vector<16x256xf32>
    %21 = arith.truncf %20 : vector<16x256xf32> to vector<16x256xbf16>
    %c0_15 = arith.constant 0 : index
    %c0_16 = arith.constant 0 : index
    %22 = vector.load %arg8[%c0_15, %c0_16] : memref<256x64xbf16, #tpu.memory_space<vmem>>, vector<256x64xbf16>
    %cst_17 = arith.constant dense<0.000000e+00> : vector<16x64xf32>
    %23 = tpu.matmul %21, %22, %cst_17 {dimension_numbers = #tpu.dot_dimension_numbers<[1], [0], [0], [1], [0, 0, 1, 1], [], []>} : vector<16x256xbf16>, vector<256x64xbf16>, vector<16x64xf32> -> vector<16x64xf32>
    %c0_18 = arith.constant 0 : index
    %c0_19 = arith.constant 0 : index
    %24 = vector.load %arg9[%c0_18, %c0_19] : memref<1x64xf32, #tpu.memory_space<vmem>>, vector<1x64xf32>
    %25 = vector.broadcast %24 : vector<1x64xf32> to vector<16x64xf32>
    %26 = arith.addf %23, %25 : vector<16x64xf32>
    %27 = math.tanh %26 : vector<16x64xf32>
    %28 = arith.truncf %27 : vector<16x64xf32> to vector<16x64xbf16>
    %c0_20 = arith.constant 0 : index
    %c0_21 = arith.constant 0 : index
    %29 = vector.load %arg10[%c0_20, %c0_21] : memref<64x128xbf16, #tpu.memory_space<vmem>>, vector<64x128xbf16>
    %cst_22 = arith.constant dense<0.000000e+00> : vector<16x128xf32>
    %30 = tpu.matmul %28, %29, %cst_22 {dimension_numbers = #tpu.dot_dimension_numbers<[1], [0], [0], [1], [0, 0, 1, 1], [], []>} : vector<16x64xbf16>, vector<64x128xbf16>, vector<16x128xf32> -> vector<16x128xf32>
    %c0_23 = arith.constant 0 : index
    %c0_24 = arith.constant 0 : index
    %31 = vector.load %arg11[%c0_23, %c0_24] : memref<1x128xf32, #tpu.memory_space<vmem>>, vector<1x128xf32>
    %32 = vector.broadcast %31 : vector<1x128xf32> to vector<16x128xf32>
    %33 = arith.addf %30, %32 : vector<16x128xf32>
    %34 = tpu.iota {dimensions = array<i32: 1>} : vector<16x128xi32>
    %c8_i32 = arith.constant 8 : i32
    %35 = vector.broadcast %c8_i32 : i32 to vector<16x128xi32>
    %36 = arith.cmpi slt, %34, %35 : vector<16x128xi32>
    %cst_25 = arith.constant -1.000000e+30 : f32
    %37 = vector.broadcast %cst_25 : f32 to vector<16x128xf32>
    %38 = arith.select %36, %33, %37 : vector<16x128xi1>, vector<16x128xf32>
    %cst_26 = arith.constant dense<0xFF800000> : vector<16xf32>
    %39 = vector.multi_reduction <maximumf>, %38, %cst_26 [1] : vector<16x128xf32> to vector<16xf32>
    %40 = vector.shape_cast %39 : vector<16xf32> to vector<16x1xf32>
    %41 = vector.broadcast %40 : vector<16x1xf32> to vector<16x128xf32>
    %42 = arith.subf %38, %41 : vector<16x128xf32>
    %43 = math.exp %42 : vector<16x128xf32>
    %cst_27 = arith.constant dense<0.000000e+00> : vector<16xf32>
    %44 = vector.multi_reduction <add>, %43, %cst_27 [1] : vector<16x128xf32> to vector<16xf32>
    %45 = vector.shape_cast %44 : vector<16xf32> to vector<16x1xf32>
    %46 = tpu.reciprocal %45 : vector<16x1xf32> -> vector<16x1xf32>
    %47 = vector.broadcast %46 : vector<16x1xf32> to vector<16x128xf32>
    %48 = arith.mulf %43, %47 : vector<16x128xf32>
    %49 = arith.select %36, %48, %33 : vector<16x128xi1>, vector<16x128xf32>
    %c0_28 = arith.constant 0 : index
    %c0_29 = arith.constant 0 : index
    %50 = vector.load %arg12[%c0_28, %c0_29] : memref<16x128xf32, #tpu.memory_space<vmem>>, vector<16x128xf32>
    tpu.vector_store %arg12[%c0_28, %c0_29], %49 {strides = array<i32>} : memref<16x128xf32, #tpu.memory_space<vmem>>, vector<16x128xf32>,
    return
  }
  func.func @transform_0(%arg0: i32) -> (i32, i32) {
    %c0_i32 = arith.constant 0 : i32
    %c0_i32_0 = arith.constant 0 : i32
    return %arg0, %c0_i32 : i32, i32
  }
  func.func @transform_1(%arg0: i32) -> (i32, i32) {
    %c0_i32 = arith.constant 0 : i32
    %c0_i32_0 = arith.constant 0 : i32
    %c0_i32_1 = arith.constant 0 : i32
    return %c0_i32, %c0_i32_0 : i32, i32
  }
  func.func @transform_2(%arg0: i32) -> (i32, i32) {
    %c0_i32 = arith.constant 0 : i32
    %c0_i32_0 = arith.constant 0 : i32
    %c0_i32_1 = arith.constant 0 : i32
    return %c0_i32, %c0_i32_0 : i32, i32
  }
  func.func @transform_3(%arg0: i32) -> (i32, i32) {
    %c0_i32 = arith.constant 0 : i32
    %c0_i32_0 = arith.constant 0 : i32
    %c0_i32_1 = arith.constant 0 : i32
    return %c0_i32, %c0_i32_0 : i32, i32
  }
  func.func @transform_4(%arg0: i32) -> (i32, i32) {
    %c0_i32 = arith.constant 0 : i32
    %c0_i32_0 = arith.constant 0 : i32
    %c0_i32_1 = arith.constant 0 : i32
    return %c0_i32, %c0_i32_0 : i32, i32
  }
  func.func @transform_5(%arg0: i32) -> (i32, i32) {
    %c0_i32 = arith.constant 0 : i32
    %c0_i32_0 = arith.constant 0 : i32
    %c0_i32_1 = arith.constant 0 : i32
    return %c0_i32, %c0_i32_0 : i32, i32
  }
  func.func @transform_6(%arg0: i32) -> (i32, i32) {
    %c0_i32 = arith.constant 0 : i32
    %c0_i32_0 = arith.constant 0 : i32
    %c0_i32_1 = arith.constant 0 : i32
    return %c0_i32, %c0_i32_0 : i32, i32
  }
  func.func @transform_7(%arg0: i32) -> (i32, i32) {
    %c0_i32 = arith.constant 0 : i32
    %c0_i32_0 = arith.constant 0 : i32
    %c0_i32_1 = arith.constant 0 : i32
    return %c0_i32, %c0_i32_0 : i32, i32
  }
  func.func @transform_8(%arg0: i32) -> (i32, i32) {
    %c0_i32 = arith.constant 0 : i32
    %c0_i32_0 = arith.constant 0 : i32
    %c0_i32_1 = arith.constant 0 : i32
    return %c0_i32, %c0_i32_0 : i32, i32
  }
  func.func @transform_9(%arg0: i32) -> (i32, i32) {
    %c0_i32 = arith.constant 0 : i32
    %c0_i32_0 = arith.constant 0 : i32
    %c0_i32_1 = arith.constant 0 : i32
    return %c0_i32, %c0_i32_0 : i32, i32
  }
  func.func @transform_10(%arg0: i32) -> (i32, i32) {
    %c0_i32 = arith.constant 0 : i32
    %c0_i32_0 = arith.constant 0 : i32
    %c0_i32_1 = arith.constant 0 : i32
    return %c0_i32, %c0_i32_0 : i32, i32
  }
  func.func @transform_11(%arg0: i32) -> (i32, i32) {
    %c0_i32 = arith.constant 0 : i32
    %c0_i32_0 = arith.constant 0 : i32
    return %arg0, %c0_i32 : i32, i32
  }
}

</mosaic_0001>

<llo_original>
// kernel: ppo_actor_critic_forward.1
$region0: #{ppo_actor_critic_forward.1}
  #allocation0 [shape = 'u32[]', space=smem, size = 0x4, offset = 0x4, fixed_abs, tag = 'smem constant byte address 0x4 - core index']
  #allocation1 [shape = 'u32[144,128]{1,0:T(1,128)}', space=vmem, size = 0x12000, scoped, tag = 'internal scratch']
  %s0 = inlined_call_operand.vmem [shape: bf16[64,32], index: 0, kind: input, shape index: {}]
  %s1 = inlined_call_operand.vmem [shape: bf16[32,1024], index: 1, kind: input, shape index: {}]
  %s2 = inlined_call_operand.vmem [shape: f32[1,1024], index: 2, kind: input, shape index: {}]
  %s3 = inlined_call_operand.vmem [shape: bf16[1024,512], index: 3, kind: input, shape index: {}]
  %s4 = inlined_call_operand.vmem [shape: f32[1,512], index: 4, kind: input, shape index: {}]
  %s5 = inlined_call_operand.vmem [shape: bf16[512,256], index: 5, kind: input, shape index: {}]
  %s6 = inlined_call_operand.vmem [shape: f32[1,256], index: 6, kind: input, shape index: {}]
  %s7 = inlined_call_operand.vmem [shape: bf16[256,64], index: 7, kind: input, shape index: {}]
  %s8 = inlined_call_operand.vmem [shape: f32[1,64], index: 8, kind: input, shape index: {}]
  %s9 = inlined_call_operand.vmem [shape: bf16[64,128], index: 9, kind: input, shape index: {}]
  %s10 = inlined_call_operand.vmem [shape: f32[1,128], index: 10, kind: input, shape index: {}]
  %s11 = inlined_call_operand.vmem [shape: f32[64,128], index: 11, kind: output, shape index: {}]
  %s12 = sld [smem:[#allocation0]]
  $region77: #{ppo_actor_critic_forward.1} parent=0
    _
  %s14 = ssub.s32 1, %s12
  %s15 = scalar_select 0, %s14, %s12
  loop: start=0, step=1, limit=6
  $region2: #{ppo_actor_critic_forward.1} parent=0 // loop_pre_header
    _
  $region3: #{ppo_actor_critic_forward.1} parent=0 // loop_header
    %s17 = sphi 0, %s21
    %p18 = scmp.ge.s32.totalorder %s17, 6
    %s27 = sphi 0, %s29
    %s30 = sphi 0, %s27
    %s31 = sphi 0, %s30
    %s47 = sphi 0, %s31
    %s51 = sphi 0, %s51
    %s53 = sphi 0, %s51
    %s54 = sphi 0, %s53
    %s68 = sphi 0, %s54
    %s72 = sphi 0, %s72
    %s74 = sphi 0, %s72
    %s75 = sphi 0, %s74
    %s89 = sphi 0, %s75
    %s93 = sphi 0, %s93
    %s95 = sphi 0, %s93
    %s96 = sphi 0, %s95
    %s110 = sphi 0, %s96
    %s114 = sphi 0, %s114
    %s116 = sphi 0, %s114
    %s117 = sphi 0, %s116
    %s131 = sphi 0, %s117
    %s135 = sphi 0, %s135
    %s137 = sphi 0, %s135
    %s138 = sphi 0, %s137
    %s152 = sphi 0, %s138
    %s156 = sphi 0, %s156
    %s158 = sphi 0, %s156
    %s159 = sphi 0, %s158
    %s173 = sphi 0, %s159
    %s177 = sphi 0, %s177
    %s179 = sphi 0, %s177
    %s180 = sphi 0, %s179
    %s194 = sphi 0, %s180
    %s198 = sphi 0, %s198
    %s200 = sphi 0, %s198
    %s201 = sphi 0, %s200
    %s215 = sphi 0, %s201
    %s219 = sphi 0, %s219
    %s221 = sphi 0, %s219
    %s222 = sphi 0, %s221
    %s236 = sphi 0, %s222
    %s240 = sphi 0, %s240
    %s242 = sphi 0, %s240
    %s243 = sphi 0, %s242
    %s257 = sphi 0, %s243
    %s263 = sphi 0, %s265
    %s266 = sphi 0, %s263
    %s267 = sphi 0, %s266
    %s283 = sphi 0, %s267
  $region4: #{ppo_actor_critic_forward.1} parent=0 // loop_header_branch
    %20 = sbr.rel (%p18) target = $region8
  $region5: #{ppo_actor_critic_forward.1} parent=0 // loop_body
    %s22 = ssub.s32 %s17, 1
    %s23 = ssub.s32 %s17, 2
    %s24 = sadd.s32 %s17, 1
    %s25 = ssub.s32 %s17, %s24
    %p26 = scmp.eq.s32.totalorder %s25, 0
    %s28 = sadd.s32 %s27, 1
    %s29 = scalar_select %p26, %s27, %s28
    %p32 = pneg %p26
    %p33 = scmp.eq.s32.totalorder %s17, 3
    %p34 = por %p32, %p33
    %p35 = scmp.ne.s32.totalorder %s27, %s30
    %p36 = scmp.eq.s32.totalorder %s17, 0
    %p37 = por %p35, %p36
    %p38 = scmp.ne.s32.totalorder %s27, %s30
    %p39 = scmp.eq.s32.totalorder %s22, 3
    %p40 = por %p38, %p39
    %p41 = scmp.ne.s32.totalorder %s30, %s31
    %p42 = scmp.eq.s32.totalorder %s22, 0
    %p43 = por %p41, %p42
    %p44 = scmp.ne.s32.totalorder %s30, %s31
    %p45 = scmp.eq.s32.totalorder %s23, 3
    %p46 = por %p44, %p45
    %p48 = scmp.ne.s32.totalorder %s31, %s47
    %p49 = scmp.eq.s32.totalorder %s23, 0
    %p50 = por %p48, %p49
    %s52 = sadd.s32 %s51, 1
    %p55 = scmp.eq.s32.totalorder %s17, 3
    %p56 = scmp.ne.s32.totalorder %s51, %s53
    %p57 = scmp.eq.s32.totalorder %s17, 0
    %p58 = por %p56, %p57
    %p59 = scmp.ne.s32.totalorder %s51, %s53
    %p60 = scmp.eq.s32.totalorder %s22, 3
    %p61 = por %p59, %p60
    %p62 = scmp.ne.s32.totalorder %s53, %s54
    %p63 = scmp.eq.s32.totalorder %s22, 0
    %p64 = por %p62, %p63
    %p65 = scmp.ne.s32.totalorder %s53, %s54
    %p66 = scmp.eq.s32.totalorder %s23, 3
    %p67 = por %p65, %p66
    %p69 = scmp.ne.s32.totalorder %s54, %s68
    %p70 = scmp.eq.s32.totalorder %s23, 0
    %p71 = por %p69, %p70
    %s73 = sadd.s32 %s72, 1
    %p76 = scmp.eq.s32.totalorder %s17, 3
    %p77 = scmp.ne.s32.totalorder %s72, %s74
    %p78 = scmp.eq.s32.totalorder %s17, 0
    %p79 = por %p77, %p78
    %p80 = scmp.ne.s32.totalorder %s72, %s74
    %p81 = scmp.eq.s32.totalorder %s22, 3
    %p82 = por %p80, %p81
    %p83 = scmp.ne.s32.totalorder %s74, %s75
    %p84 = scmp.eq.s32.totalorder %s22, 0
    %p85 = por %p83, %p84
    %p86 = scmp.ne.s32.totalorder %s74, %s75
    %p87 = scmp.eq.s32.totalorder %s23, 3
    %p88 = por %p86, %p87
    %p90 = scmp.ne.s32.totalorder %s75, %s89
    %p91 = scmp.eq.s32.totalorder %s23, 0
    %p92 = por %p90, %p91
    %s94 = sadd.s32 %s93, 1
    %p97 = scmp.eq.s32.totalorder %s17, 3
    %p98 = scmp.ne.s32.totalorder %s93, %s95
    %p99 = scmp.eq.s32.totalorder %s17, 0
    %p100 = por %p98, %p99
    %p101 = scmp.ne.s32.totalorder %s93, %s95
    %p102 = scmp.eq.s32.totalorder %s22, 3
    %p103 = por %p101, %p102
    %p104 = scmp.ne.s32.totalorder %s95, %s96
    %p105 = scmp.eq.s32.totalorder %s22, 0
    %p106 = por %p104, %p105
    %p107 = scmp.ne.s32.totalorder %s95, %s96
    %p108 = scmp.eq.s32.totalorder %s23, 3
    %p109 = por %p107, %p108
    %p111 = scmp.ne.s32.totalorder %s96, %s110
    %p112 = scmp.eq.s32.totalorder %s23, 0
    %p113 = por %p111, %p112
    %s115 = sadd.s32 %s114, 1
    %p118 = scmp.eq.s32.totalorder %s17, 3
    %p119 = scmp.ne.s32.totalorder %s114, %s116
    %p120 = scmp.eq.s32.totalorder %s17, 0
    %p121 = por %p119, %p120
    %p122 = scmp.ne.s32.totalorder %s114, %s116
    %p123 = scmp.eq.s32.totalorder %s22, 3
    %p124 = por %p122, %p123
    %p125 = scmp.ne.s32.totalorder %s116, %s117
    %p126 = scmp.eq.s32.totalorder %s22, 0
    %p127 = por %p125, %p126
    %p128 = scmp.ne.s32.totalorder %s116, %s117
    %p129 = scmp.eq.s32.totalorder %s23, 3
    %p130 = por %p128, %p129
    %p132 = scmp.ne.s32.totalorder %s117, %s131
    %p133 = scmp.eq.s32.totalorder %s23, 0
    %p134 = por %p132, %p133
    %s136 = sadd.s32 %s135, 1
    %p139 = scmp.eq.s32.totalorder %s17, 3
    %p140 = scmp.ne.s32.totalorder %s135, %s137
    %p141 = scmp.eq.s32.totalorder %s17, 0
    %p142 = por %p140, %p141
    %p143 = scmp.ne.s32.totalorder %s135, %s137
    %p144 = scmp.eq.s32.totalorder %s22, 3
    %p145 = por %p143, %p144
    %p146 = scmp.ne.s32.totalorder %s137, %s138
    %p147 = scmp.eq.s32.totalorder %s22, 0
    %p148 = por %p146, %p147
    %p149 = scmp.ne.s32.totalorder %s137, %s138
    %p150 = scmp.eq.s32.totalorder %s23, 3
    %p151 = por %p149, %p150
    %p153 = scmp.ne.s32.totalorder %s138, %s152
    %p154 = scmp.eq.s32.totalorder %s23, 0
    %p155 = por %p153, %p154
    %s157 = sadd.s32 %s156, 1
    %p160 = scmp.eq.s32.totalorder %s17, 3
    %p161 = scmp.ne.s32.totalorder %s156, %s158
    %p162 = scmp.eq.s32.totalorder %s17, 0
    %p163 = por %p161, %p162
    %p164 = scmp.ne.s32.totalorder %s156, %s158
    %p165 = scmp.eq.s32.totalorder %s22, 3
    %p166 = por %p164, %p165
    %p167 = scmp.ne.s32.totalorder %s158, %s159
    %p168 = scmp.eq.s32.totalorder %s22, 0
    %p169 = por %p167, %p168
    %p170 = scmp.ne.s32.totalorder %s158, %s159
    %p171 = scmp.eq.s32.totalorder %s23, 3
    %p172 = por %p170, %p171
    %p174 = scmp.ne.s32.totalorder %s159, %s173
    %p175 = scmp.eq.s32.totalorder %s23, 0
    %p176 = por %p174, %p175
    %s178 = sadd.s32 %s177, 1
    %p181 = scmp.eq.s32.totalorder %s17, 3
    %p182 = scmp.ne.s32.totalorder %s177, %s179
    %p183 = scmp.eq.s32.totalorder %s17, 0
    %p184 = por %p182, %p183
    %p185 = scmp.ne.s32.totalorder %s177, %s179
    %p186 = scmp.eq.s32.totalorder %s22, 3
    %p187 = por %p185, %p186
    %p188 = scmp.ne.s32.totalorder %s179, %s180
    %p189 = scmp.eq.s32.totalorder %s22, 0
    %p190 = por %p188, %p189
    %p191 = scmp.ne.s32.totalorder %s179, %s180
    %p192 = scmp.eq.s32.totalorder %s23, 3
    %p193 = por %p191, %p192
    %p195 = scmp.ne.s32.totalorder %s180, %s194
    %p196 = scmp.eq.s32.totalorder %s23, 0
    %p197 = por %p195, %p196
    %s199 = sadd.s32 %s198, 1
    %p202 = scmp.eq.s32.totalorder %s17, 3
    %p203 = scmp.ne.s32.totalorder %s198, %s200
    %p204 = scmp.eq.s32.totalorder %s17, 0
    %p205 = por %p203, %p204
    %p206 = scmp.ne.s32.totalorder %s198, %s200
    %p207 = scmp.eq.s32.totalorder %s22, 3
    %p208 = por %p206, %p207
    %p209 = scmp.ne.s32.totalorder %s200, %s201
    %p210 = scmp.eq.s32.totalorder %s22, 0
    %p211 = por %p209, %p210
    %p212 = scmp.ne.s32.totalorder %s200, %s201
    %p213 = scmp.eq.s32.totalorder %s23, 3
    %p214 = por %p212, %p213
    %p216 = scmp.ne.s32.totalorder %s201, %s215
    %p217 = scmp.eq.s32.totalorder %s23, 0
    %p218 = por %p216, %p217
    %s220 = sadd.s32 %s219, 1
    %p223 = scmp.eq.s32.totalorder %s17, 3
    %p224 = scmp.ne.s32.totalorder %s219, %s221
    %p225 = scmp.eq.s32.totalorder %s17, 0
    %p226 = por %p224, %p225
    %p227 = scmp.ne.s32.totalorder %s219, %s221
    %p228 = scmp.eq.s32.totalorder %s22, 3
    %p229 = por %p227, %p228
    %p230 = scmp.ne.s32.totalorder %s221, %s222
    %p231 = scmp.eq.s32.totalorder %s22, 0
    %p232 = por %p230, %p231
    %p233 = scmp.ne.s32.totalorder %s221, %s222
    %p234 = scmp.eq.s32.totalorder %s23, 3
    %p235 = por %p233, %p234
    %p237 = scmp.ne.s32.totalorder %s222, %s236
    %p238 = scmp.eq.s32.totalorder %s23, 0
    %p239 = por %p237, %p238
    %s241 = sadd.s32 %s240, 1
    %p244 = scmp.eq.s32.totalorder %s17, 3
    %p245 = scmp.ne.s32.totalorder %s240, %s242
    %p246 = scmp.eq.s32.totalorder %s17, 0
    %p247 = por %p245, %p246
    %p248 = scmp.ne.s32.totalorder %s240, %s242
    %p249 = scmp.eq.s32.totalorder %s22, 3
    %p250 = por %p248, %p249
    %p251 = scmp.ne.s32.totalorder %s242, %s243
    %p252 = scmp.eq.s32.totalorder %s22, 0
    %p253 = por %p251, %p252
    %p254 = scmp.ne.s32.totalorder %s242, %s243
    %p255 = scmp.eq.s32.totalorder %s23, 3
    %p256 = por %p254, %p255
    %p258 = scmp.ne.s32.totalorder %s243, %s257
    %p259 = scmp.eq.s32.totalorder %s23, 0
    %p260 = por %p258, %p259
    %s261 = ssub.s32 %s17, %s24
    %p262 = scmp.eq.s32.totalorder %s261, 0
    %s264 = sadd.s32 %s263, 1
    %s265 = scalar_select %p262, %s263, %s264
    %p268 = pneg %p262
    %p269 = scmp.eq.s32.totalorder %s17, 3
    %p270 = por %p268, %p269
    %p271 = scmp.ne.s32.totalorder %s263, %s266
    %p272 = scmp.eq.s32.totalorder %s17, 0
    %p273 = por %p271, %p272
    %p274 = scmp.ne.s32.totalorder %s263, %s266
    %p275 = scmp.eq.s32.totalorder %s22, 3
    %p276 = por %p274, %p275
    %p277 = scmp.ne.s32.totalorder %s266, %s267
    %p278 = scmp.eq.s32.totalorder %s22, 0
    %p279 = por %p277, %p278
    %p280 = scmp.ne.s32.totalorder %s266, %s267
    %p281 = scmp.eq.s32.totalorder %s23, 3
    %p282 = por %p280, %p281
    %p284 = scmp.ne.s32.totalorder %s267, %s283
    %p285 = scmp.eq.s32.totalorder %s23, 0
    %p286 = por %p284, %p285
    %p287 = scmp.le.s32.totalorder 1, %s17
    %p288 = scmp.lt.s32.totalorder %s17, 5
    %p289 = pnand %p287, %p288
    %p290 = pneg %p289
    // Predicated region
    $region9: #{ppo_actor_critic_forward.1} parent=5 // pred_check
      _
    $region10: #{ppo_actor_critic_forward.1} parent=5 // pred_check_branch
      %292 = sbr.rel (%p289) target = $region12
    $region11: #{ppo_actor_critic_forward.1} parent=5 // pred_region
      %s293 = ssub.s32 %s17, 1
      // Predicated region
      $region13: #{ppo_actor_critic_forward.1} parent=11 // pred_check
        %p294 = pneg %p64
      $region14: #{ppo_actor_critic_forward.1} parent=11 // pred_check_branch
        %296 = sbr.rel (%p294) target = $region16
      $region15: #{ppo_actor_critic_forward.1} parent=11 // pred_region
        _
      $region16: #{ppo_actor_critic_forward.1} parent=11 // pred_fallthru
        _
      // Predicated region
      $region17: #{ppo_actor_critic_forward.1} parent=11 // pred_check
        %p297 = pneg %p85
      $region18: #{ppo_actor_critic_forward.1} parent=11 // pred_check_branch
        %299 = sbr.rel (%p297) target = $region20
      $region19: #{ppo_actor_critic_forward.1} parent=11 // pred_region
        _
      $region20: #{ppo_actor_critic_forward.1} parent=11 // pred_fallthru
        _
      // Predicated region
      $region21: #{ppo_actor_critic_forward.1} parent=11 // pred_check
        %p300 = pneg %p106
      $region22: #{ppo_actor_critic_forward.1} parent=11 // pred_check_branch
        %302 = sbr.rel (%p300) target = $region24
      $region23: #{ppo_actor_critic_forward.1} parent=11 // pred_region
        _
      $region24: #{ppo_actor_critic_forward.1} parent=11 // pred_fallthru
        _
      // Predicated region
      $region25: #{ppo_actor_critic_forward.1} parent=11 // pred_check
        %p303 = pneg %p127
      $region26: #{ppo_actor_critic_forward.1} parent=11 // pred_check_branch
        %305 = sbr.rel (%p303) target = $region28
      $region27: #{ppo_actor_critic_forward.1} parent=11 // pred_region
        _
      $region28: #{ppo_actor_critic_forward.1} parent=11 // pred_fallthru
        _
      // Predicated region
      $region29: #{ppo_actor_critic_forward.1} parent=11 // pred_check
        %p306 = pneg %p148
      $region30: #{ppo_actor_critic_forward.1} parent=11 // pred_check_branch
        %308 = sbr.rel (%p306) target = $region32
      $region31: #{ppo_actor_critic_forward.1} parent=11 // pred_region
        _
      $region32: #{ppo_actor_critic_forward.1} parent=11 // pred_fallthru
        _
      // Predicated region
      $region33: #{ppo_actor_critic_forward.1} parent=11 // pred_check
        %p309 = pneg %p169
      $region34: #{ppo_actor_critic_forward.1} parent=11 // pred_check_branch
        %311 = sbr.rel (%p309) target = $region36
      $region35: #{ppo_actor_critic_forward.1} parent=11 // pred_region
        _
      $region36: #{ppo_actor_critic_forward.1} parent=11 // pred_fallthru
        _
      // Predicated region
      $region37: #{ppo_actor_critic_forward.1} parent=11 // pred_check
        %p312 = pneg %p190
      $region38: #{ppo_actor_critic_forward.1} parent=11 // pred_check_branch
        %314 = sbr.rel (%p312) target = $region40
      $region39: #{ppo_actor_critic_forward.1} parent=11 // pred_region
        _
      $region40: #{ppo_actor_critic_forward.1} parent=11 // pred_fallthru
        _
      // Predicated region
      $region41: #{ppo_actor_critic_forward.1} parent=11 // pred_check
        %p315 = pneg %p211
      $region42: #{ppo_actor_critic_forward.1} parent=11 // pred_check_branch
        %317 = sbr.rel (%p315) target = $region44
      $region43: #{ppo_actor_critic_forward.1} parent=11 // pred_region
        _
      $region44: #{ppo_actor_critic_forward.1} parent=11 // pred_fallthru
        _
      // Predicated region
      $region45: #{ppo_actor_critic_forward.1} parent=11 // pred_check
        %p318 = pneg %p232
      $region46: #{ppo_actor_critic_forward.1} parent=11 // pred_check_branch
        %320 = sbr.rel (%p318) target = $region48
      $region47: #{ppo_actor_critic_forward.1} parent=11 // pred_region
        _
      $region48: #{ppo_actor_critic_forward.1} parent=11 // pred_fallthru
        _
      // Predicated region
      $region49: #{ppo_actor_critic_forward.1} parent=11 // pred_check
        %p321 = pneg %p253
      $region50: #{ppo_actor_critic_forward.1} parent=11 // pred_check_branch
        %323 = sbr.rel (%p321) target = $region52
      $region51: #{ppo_actor_critic_forward.1} parent=11 // pred_region
        _
      $region52: #{ppo_actor_critic_forward.1} parent=11 // pred_fallthru
        _
    $region12: #{ppo_actor_critic_forward.1} parent=5 // pred_fallthru
      _
    %p324 = scmp.lt.s32.totalorder %s17, 4
    // Predicated region
    $region53: #{ppo_actor_critic_forward.1} parent=5 // pred_check
      %p325 = pneg %p324
    $region54: #{ppo_actor_critic_forward.1} parent=5 // pred_check_branch
      %327 = sbr.rel (%p325) target = $region56
    $region55: #{ppo_actor_critic_forward.1} parent=5 // pred_region
      // Predicated region
      $region57: #{ppo_actor_critic_forward.1} parent=55 // pred_check
        %p328 = pneg %p37
      $region58: #{ppo_actor_critic_forward.1} parent=55 // pred_check_branch
        %330 = sbr.rel (%p328) target = $region60
      $region59: #{ppo_actor_critic_forward.1} parent=55 // pred_region
        %s331 = smul.u32 2, %s17
        %p332 = scmp.lt.s32.totalorder %s331, 7
        %s333 = scalar_select %p332, %s331, 7
        %s334 = smul.addr %s333, 4
        %s335 = scalar_lea.vmem %s0, %s334
        %s336 = smul.u32 2, %s17
      $region60: #{ppo_actor_critic_forward.1} parent=55 // pred_fallthru
        _
    $region56: #{ppo_actor_critic_forward.1} parent=5 // pred_fallthru
      _
    %p337 = scmp.le.s32.totalorder 1, %s17
    %p338 = scmp.lt.s32.totalorder %s17, 5
    %p339 = pnand %p337, %p338
    %p340 = pneg %p339
    // Predicated region
    $region61: #{ppo_actor_critic_forward.1} parent=5 // pred_check
      _
    $region62: #{ppo_actor_critic_forward.1} parent=5 // pred_check_branch
      %342 = sbr.rel (%p339) target = $region64
    $region63: #{ppo_actor_critic_forward.1} parent=5 // pred_region
      %s343 = ssub.s32 %s17, 1
      %s344 = smul.u32 2, %s22
      %p345 = scmp.lt.s32.totalorder %s344, 7
      %s346 = scalar_select %p345, %s344, 7
      %s347 = smul.addr %s346, 4
      %s348 = scalar_lea.vmem %s0, %s347
      %p349 = pneg %p43
      %p350 = pneg %p40
      %p351 = pneg %p64
      %p352 = pneg %p61
      %p353 = pneg %p85
      %p354 = pneg %p82
      %p355 = pneg %p106
      %p356 = pneg %p103
      %p357 = pneg %p127
      %p358 = pneg %p124
      %p359 = pneg %p148
      %p360 = pneg %p145
      %p361 = pneg %p169
      %p362 = pneg %p166
      %p363 = pneg %p190
      %p364 = pneg %p187
      %p365 = pneg %p211
      %p366 = pneg %p208
      %p367 = pneg %p232
      %p368 = pneg %p229
      %p369 = pneg %p253
      %p370 = pneg %p250
      %p371 = pneg %p279
      %p372 = pneg %p276
      %s373 = smul.u32 2, %s22
      %p374 = scmp.lt.s32.totalorder %s373, 7
      %s375 = scalar_select %p374, %s373, 7
      %s376 = smul.addr %s375, 8
      %s377 = scalar_lea.vmem %s11, %s376
      %s378 = smul.u32 2, %s22
      %p379 = scmp.lt.s32.totalorder %s378, 7
      %s380 = scalar_select %p379, %s378, 7
      %s381 = smul.addr %s380, 4
      %s382 = scalar_lea.vmem %s0, %s381
      %s383 = smul.u32 2, %s22
      %s384 = smul.u32 2, %s22
      %p385 = scmp.lt.s32.totalorder %s384, 7
      %s386 = scalar_select %p385, %s384, 7
      %s387 = smul.addr %s386, 8
      %s388 = scalar_lea.vmem %s11, %s387
      %s389 = smul.u32 2, %s22
      %v391 = vld [vmem:[%s382] sm:$0xf]
      %v392 = vld [vmem:[%s382 + $0x4] sm:$0xf]
      %v393 = vld [vmem:[%s1] sm:$0xff]
      %v394 = vld [vmem:[%s1 + $0x8] sm:$0xff]
      %v395 = vld [vmem:[%s1 + $0x10] sm:$0xff]
      %v396 = vld [vmem:[%s1 + $0x18] sm:$0xff]
      %v397 = vld [vmem:[%s1 + $0x20] sm:$0xff]
      %v398 = vld [vmem:[%s1 + $0x28] sm:$0xff]
      %v399 = vld [vmem:[%s1 + $0x30] sm:$0xff]
      %v400 = vld [vmem:[%s1 + $0x38] sm:$0xff]
      %v401 = vld [vmem:[%s1 + $0x40] sm:$0xff]
      %v402 = vld [vmem:[%s1 + $0x48] sm:$0xff]
      %v403 = vld [vmem:[%s1 + $0x50] sm:$0xff]
      %v404 = vld [vmem:[%s1 + $0x58] sm:$0xff]
      %v405 = vld [vmem:[%s1 + $0x60] sm:$0xff]
      %v406 = vld [vmem:[%s1 + $0x68] sm:$0xff]
      %v407 = vld [vmem:[%s1 + $0x70] sm:$0xff]
      %v408 = vld [vmem:[%s1 + $0x78] sm:$0xff]
      %v409 = vld [vmem:[%s2] sm:$0xff]
      %v411 = vlaneseq
      %v412 = vshrl.u32 %v411, 7
      %v413 = vsub.s32 0, %v412
      %v414 = vrot.slane %v409, %v413
      %v415 = vlaneseq
      %v416 = vshrl.u32 %v415, 7
      %v417 = vsub.s32 1, %v416
      %v418 = vrot.slane %v409, %v417
      %v419 = vlaneseq
      %v420 = vshrl.u32 %v419, 7
      %v421 = vsub.s32 2, %v420
      %v422 = vrot.slane %v409, %v421
      %v423 = vlaneseq
      %v424 = vshrl.u32 %v423, 7
      %v425 = vsub.s32 3, %v424
      %v426 = vrot.slane %v409, %v425
      %v427 = vlaneseq
      %v428 = vshrl.u32 %v427, 7
      %v429 = vsub.s32 4, %v428
      %v430 = vrot.slane %v409, %v429
      %v431 = vlaneseq
      %v432 = vshrl.u32 %v431, 7
      %v433 = vsub.s32 5, %v432
      %v434 = vrot.slane %v409, %v433
      %v435 = vlaneseq
      %v436 = vshrl.u32 %v435, 7
      %v437 = vsub.s32 6, %v436
      %v438 = vrot.slane %v409, %v437
      %v439 = vlaneseq
      %v440 = vshrl.u32 %v439, 7
      %v441 = vsub.s32 7, %v440
      %v442 = vrot.slane %v409, %v441
      %v453 = vunpack.c.l.b16 %v391
      %v454 = vunpack.c.l.b16 %v392
      %v455 = vpack.c.b16 %v454, %v453
      %v472 = vunpack.c.l.b16 %v393
      %v473 = vunpack.c.h.b16 %v393
      %v474 = vunpack.c.l.b16 %v394
      %v475 = vunpack.c.h.b16 %v394
      %v476 = vunpack.c.l.b16 %v395
      %v477 = vunpack.c.h.b16 %v395
      %v478 = vunpack.c.l.b16 %v396
      %v479 = vunpack.c.h.b16 %v396
      %v480 = vunpack.c.l.b16 %v397
      %v481 = vunpack.c.h.b16 %v397
      %v482 = vunpack.c.l.b16 %v398
      %v483 = vunpack.c.h.b16 %v398
      %v484 = vunpack.c.l.b16 %v399
      %v485 = vunpack.c.h.b16 %v399
      %v486 = vunpack.c.l.b16 %v400
      %v487 = vunpack.c.h.b16 %v400
      %v488 = vunpack.c.l.b16 %v401
      %v489 = vunpack.c.h.b16 %v401
      %v490 = vunpack.c.l.b16 %v402
      %v491 = vunpack.c.h.b16 %v402
      %v492 = vunpack.c.l.b16 %v403
      %v493 = vunpack.c.h.b16 %v403
      %v494 = vunpack.c.l.b16 %v404
      %v495 = vunpack.c.h.b16 %v404
      %v496 = vunpack.c.l.b16 %v405
      %v497 = vunpack.c.h.b16 %v405
      %v498 = vunpack.c.l.b16 %v406
      %v499 = vunpack.c.h.b16 %v406
      %v500 = vunpack.c.l.b16 %v407
      %v501 = vunpack.c.h.b16 %v407
      %v502 = vunpack.c.l.b16 %v408
      %v503 = vunpack.c.h.b16 %v408
      %v504 = vpack.c.b16 %v480, %v472
      %v505 = vpack.c.b16 %v481, %v473
      %v506 = vpack.c.b16 %v482, %v474
      %v507 = vpack.c.b16 %v483, %v475
      %v508 = vpack.c.b16 %v484, %v476
      %v509 = vpack.c.b16 %v485, %v477
      %v510 = vpack.c.b16 %v486, %v478
      %v511 = vpack.c.b16 %v487, %v479
      %v512 = vpack.c.b16 %v496, %v488
      %v513 = vpack.c.b16 %v497, %v489
      %v514 = vpack.c.b16 %v498, %v490
      %v515 = vpack.c.b16 %v499, %v491
      %v516 = vpack.c.b16 %v500, %v492
      %v517 = vpack.c.b16 %v501, %v493
      %v518 = vpack.c.b16 %v502, %v494
      %v519 = vpack.c.b16 %v503, %v495
      %vm536 = vcmask 261120
      %v538 = vsel %vm536, %v455, 0
      %540 = vmatprep.subr.bf16.mxu0 %v505
      %541 = vmatpush1.bf16.msra.mxu0 %v504
      %542 = vmatprep.subr.bf16.mxu0 %v513
      %543 = vmatpush1.bf16.msra.mxu0 %v512
      %544 = vmatprep.subr.bf16.mxu0 0
      %545 = vmatpush1.bf16.msra.mxu0 0
      %546 = vmatprep.subr.bf16.mxu0 0
      %547 = vmatpush1.bf16.msra.mxu0 0
      %548 = vmatprep.subr.bf16.mxu0 0
      %549 = vmatpush1.bf16.msra.mxu0 0
      %550 = vmatprep.subr.bf16.mxu0 0
      %551 = vmatpush1.bf16.msra.mxu0 0
      %552 = vmatprep.subr.bf16.mxu0 0
      %553 = vmatpush1.bf16.msra.mxu0 0
      %554 = vmatprep.subr.bf16.mxu0 0
      %555 = vmatpush1.bf16.msra.mxu0 0
      %556 = vmatprep.subr.bf16.mxu0 0
      %557 = vmatpush1.bf16.msra.mxu0 0
      %558 = vmatprep.subr.bf16.mxu0 0
      %559 = vmatpush1.bf16.msra.mxu0 0
      %560 = vmatprep.subr.bf16.mxu0 0
      %561 = vmatpush1.bf16.msra.mxu0 0
      %562 = vmatprep.subr.bf16.mxu0 0
      %563 = vmatpush1.bf16.msra.mxu0 0
      %564 = vmatprep.subr.bf16.mxu0 0
      %565 = vmatpush1.bf16.msra.mxu0 0
      %566 = vmatprep.subr.bf16.mxu0 0
      %567 = vmatpush1.bf16.msra.mxu0 0
      %568 = vmatprep.subr.bf16.mxu0 0
      %569 = vmatpush1.bf16.msra.mxu0 0
      %570 = vmatprep.subr.bf16.mxu0 0
      %571 = vmatpush1.bf16.msra.mxu0 0
      %572 = vmatprep.mubr.bf16.mxu0 0
      %573 = vmatmul.mubr.bf16.gmra.mrb[0].mxu0 %v538
      %v574 = vpop.f32.mrb[0].mxu0
      %v575 = vadd.f32 %v414, %v574
      %v576 = vpop.f32.mrb[0].mxu0
      %v577 = vadd.f32 %v418, %v576
      %v578 = vpop.f32.mrb[0].mxu0
      %v579 = vadd.f32 %v414, %v578
      %v580 = vpop.f32.mrb[0].mxu0
      %v581 = vadd.f32 %v418, %v580
      %582 = vdwg.mxu0
      %583 = vmatprep.subr.bf16.mxu0 %v507
      %584 = vmatpush1.bf16.msra.mxu0 %v506
      %585 = vmatprep.subr.bf16.mxu0 %v515
      %586 = vmatpush1.bf16.msra.mxu0 %v514
      %587 = vmatprep.subr.bf16.mxu0 0
      %588 = vmatpush1.bf16.msra.mxu0 0
      %589 = vmatprep.subr.bf16.mxu0 0
      %590 = vmatpush1.bf16.msra.mxu0 0
      %591 = vmatprep.subr.bf16.mxu0 0
      %592 = vmatpush1.bf16.msra.mxu0 0
      %593 = vmatprep.subr.bf16.mxu0 0
      %594 = vmatpush1.bf16.msra.mxu0 0
      %595 = vmatprep.subr.bf16.mxu0 0
      %596 = vmatpush1.bf16.msra.mxu0 0
      %597 = vmatprep.subr.bf16.mxu0 0
      %598 = vmatpush1.bf16.msra.mxu0 0
      %599 = vmatprep.subr.bf16.mxu0 0
      %600 = vmatpush1.bf16.msra.mxu0 0
      %601 = vmatprep.subr.bf16.mxu0 0
      %602 = vmatpush1.bf16.msra.mxu0 0
      %603 = vmatprep.subr.bf16.mxu0 0
      %604 = vmatpush1.bf16.msra.mxu0 0
      %605 = vmatprep.subr.bf16.mxu0 0
      %606 = vmatpush1.bf16.msra.mxu0 0
      %607 = vmatprep.subr.bf16.mxu0 0
      %608 = vmatpush1.bf16.msra.mxu0 0
      %609 = vmatprep.subr.bf16.mxu0 0
      %610 = vmatpush1.bf16.msra.mxu0 0
      %611 = vmatprep.subr.bf16.mxu0 0
      %612 = vmatpush1.bf16.msra.mxu0 0
      %613 = vmatprep.subr.bf16.mxu0 0
      %614 = vmatpush1.bf16.msra.mxu0 0
      %615 = vmatprep.mubr.bf16.mxu0 0
      %616 = vmatmul.mubr.bf16.gmra.mrb[0].mxu0 %v538
      %v617 = vpop.f32.mrb[0].mxu0
      %v618 = vadd.f32 %v422, %v617
      %v619 = vpop.f32.mrb[0].mxu0
      %v620 = vadd.f32 %v426, %v619
      %v621 = vpop.f32.mrb[0].mxu0
      %v622 = vadd.f32 %v422, %v621
      %v623 = vpop.f32.mrb[0].mxu0
      %v624 = vadd.f32 %v426, %v623
      %625 = vdwg.mxu0
      %626 = vmatprep.subr.bf16.mxu0 %v509
      %627 = vmatpush1.bf16.msra.mxu0 %v508
      %628 = vmatprep.subr.bf16.mxu0 %v517
      %629 = vmatpush1.bf16.msra.mxu0 %v516
      %630 = vmatprep.subr.bf16.mxu0 0
      %631 = vmatpush1.bf16.msra.mxu0 0
      %632 = vmatprep.subr.bf16.mxu0 0
      %633 = vmatpush1.bf16.msra.mxu0 0
      %634 = vmatprep.subr.bf16.mxu0 0
      %635 = vmatpush1.bf16.msra.mxu0 0
      %636 = vmatprep.subr.bf16.mxu0 0
      %637 = vmatpush1.bf16.msra.mxu0 0
      %638 = vmatprep.subr.bf16.mxu0 0
      %639 = vmatpush1.bf16.msra.mxu0 0
      %640 = vmatprep.subr.bf16.mxu0 0
      %641 = vmatpush1.bf16.msra.mxu0 0
      %642 = vmatprep.subr.bf16.mxu0 0
      %643 = vmatpush1.bf16.msra.mxu0 0
      %644 = vmatprep.subr.bf16.mxu0 0
      %645 = vmatpush1.bf16.msra.mxu0 0
      %646 = vmatprep.subr.bf16.mxu0 0
      %647 = vmatpush1.bf16.msra.mxu0 0
      %648 = vmatprep.subr.bf16.mxu0 0
      %649 = vmatpush1.bf16.msra.mxu0 0
      %650 = vmatprep.subr.bf16.mxu0 0
      %651 = vmatpush1.bf16.msra.mxu0 0
      %652 = vmatprep.subr.bf16.mxu0 0
      %653 = vmatpush1.bf16.msra.mxu0 0
      %654 = vmatprep.subr.bf16.mxu0 0
      %655 = vmatpush1.bf16.msra.mxu0 0
      %656 = vmatprep.subr.bf16.mxu0 0
      %657 = vmatpush1.bf16.msra.mxu0 0
      %658 = vmatprep.mubr.bf16.mxu0 0
      %659 = vmatmul.mubr.bf16.gmra.mrb[0].mxu0 %v538
      %v660 = vpop.f32.mrb[0].mxu0
      %v661 = vadd.f32 %v430, %v660
      %v662 = vpop.f32.mrb[0].mxu0
      %v663 = vadd.f32 %v434, %v662
      %v664 = vpop.f32.mrb[0].mxu0
      %v665 = vadd.f32 %v430, %v664
      %v666 = vpop.f32.mrb[0].mxu0
      %v667 = vadd.f32 %v434, %v666
      %668 = vdwg.mxu0
      %669 = vmatprep.subr.bf16.mxu0 %v511
      %670 = vmatpush1.bf16.msra.mxu0 %v510
      %671 = vmatprep.subr.bf16.mxu0 %v519
      %672 = vmatpush1.bf16.msra.mxu0 %v518
      %673 = vmatprep.subr.bf16.mxu0 0
      %674 = vmatpush1.bf16.msra.mxu0 0
      %675 = vmatprep.subr.bf16.mxu0 0
      %676 = vmatpush1.bf16.msra.mxu0 0
      %677 = vmatprep.subr.bf16.mxu0 0
      %678 = vmatpush1.bf16.msra.mxu0 0
      %679 = vmatprep.subr.bf16.mxu0 0
      %680 = vmatpush1.bf16.msra.mxu0 0
      %681 = vmatprep.subr.bf16.mxu0 0
      %682 = vmatpush1.bf16.msra.mxu0 0
      %683 = vmatprep.subr.bf16.mxu0 0
      %684 = vmatpush1.bf16.msra.mxu0 0
      %685 = vmatprep.subr.bf16.mxu0 0
      %686 = vmatpush1.bf16.msra.mxu0 0
      %687 = vmatprep.subr.bf16.mxu0 0
      %688 = vmatpush1.bf16.msra.mxu0 0
      %689 = vmatprep.subr.bf16.mxu0 0
      %690 = vmatpush1.bf16.msra.mxu0 0
      %691 = vmatprep.subr.bf16.mxu0 0
      %692 = vmatpush1.bf16.msra.mxu0 0
      %693 = vmatprep.subr.bf16.mxu0 0
      %694 = vmatpush1.bf16.msra.mxu0 0
      %695 = vmatprep.subr.bf16.mxu0 0
      %696 = vmatpush1.bf16.msra.mxu0 0
      %697 = vmatprep.subr.bf16.mxu0 0
      %698 = vmatpush1.bf16.msra.mxu0 0
      %699 = vmatprep.subr.bf16.mxu0 0
      %700 = vmatpush1.bf16.msra.mxu0 0
      %701 = vmatprep.mubr.bf16.mxu0 0
      %702 = vmatmul.mubr.bf16.gmra.mrb[0].mxu0 %v538
      %v703 = vpop.f32.mrb[0].mxu0
      %v704 = vadd.f32 %v438, %v703
      %v705 = vpop.f32.mrb[0].mxu0
      %v706 = vadd.f32 %v442, %v705
      %v707 = vpop.f32.mrb[0].mxu0
      %v708 = vadd.f32 %v438, %v707
      %v709 = vpop.f32.mrb[0].mxu0
      %v710 = vadd.f32 %v442, %v709
      %711 = vdwg.mxu0
      %v712 = vtanh.pop %v575
      %v713 = vtanh.pop %v577
      %v714 = vtanh.pop %v618
      %v715 = vtanh.pop %v620
      %v716 = vtanh.pop %v661
      %v717 = vtanh.pop %v663
      %v718 = vtanh.pop %v704
      %v719 = vtanh.pop %v706
      %v720 = vtanh.pop %v579
      %v721 = vtanh.pop %v581
      %v722 = vtanh.pop %v622
      %v723 = vtanh.pop %v624
      %v724 = vtanh.pop %v665
      %v725 = vtanh.pop %v667
      %v726 = vtanh.pop %v708
      %v727 = vtanh.pop %v710
      %v728 = vpack.c.bf16 %v720, %v712
      %v729 = vpack.c.bf16 %v721, %v713
      %v730 = vpack.c.bf16 %v722, %v714
      %v731 = vpack.c.bf16 %v723, %v715
      %v732 = vpack.c.bf16 %v724, %v716
      %v733 = vpack.c.bf16 %v725, %v717
      %v734 = vpack.c.bf16 %v726, %v718
      %v735 = vpack.c.bf16 %v727, %v719
      %v736 = vld [vmem:[%s3] sm:$0xff]
      %v737 = vld [vmem:[%s3 + $0x8] sm:$0xff]
      %v738 = vld [vmem:[%s3 + $0x10] sm:$0xff]
      %v739 = vld [vmem:[%s3 + $0x18] sm:$0xff]
      %v740 = vld [vmem:[%s3 + $0x20] sm:$0xff]
      %v741 = vld [vmem:[%s3 + $0x28] sm:$0xff]
      %v742 = vld [vmem:[%s3 + $0x30] sm:$0xff]
      %v743 = vld [vmem:[%s3 + $0x38] sm:$0xff]
      %v744 = vld [vmem:[%s3 + $0x40] sm:$0xff]
      %v745 = vld [vmem:[%s3 + $0x48] sm:$0xff]
      %v746 = vld [vmem:[%s3 + $0x50] sm:$0xff]
      %v747 = vld [vmem:[%s3 + $0x58] sm:$0xff]
      %v748 = vld [vmem:[%s3 + $0x60] sm:$0xff]
      %v749 = vld [vmem:[%s3 + $0x68] sm:$0xff]
      %v750 = vld [vmem:[%s3 + $0x70] sm:$0xff]
      %v751 = vld [vmem:[%s3 + $0x78] sm:$0xff]
      %v752 = vld [vmem:[%s3 + $0x80] sm:$0xff]
      %v753 = vld [vmem:[%s3 + $0x88] sm:$0xff]
      %v754 = vld [vmem:[%s3 + $0x90] sm:$0xff]
      %v755 = vld [vmem:[%s3 + $0x98] sm:$0xff]
      %v756 = vld [vmem:[%s3 + $0xa0] sm:$0xff]
      %v757 = vld [vmem:[%s3 + $0xa8] sm:$0xff]
      %v758 = vld [vmem:[%s3 + $0xb0] sm:$0xff]
      %v759 = vld [vmem:[%s3 + $0xb8] sm:$0xff]
      %v760 = vld [vmem:[%s3 + $0xc0] sm:$0xff]
      %v761 = vld [vmem:[%s3 + $0xc8] sm:$0xff]
      %v762 = vld [vmem:[%s3 + $0xd0] sm:$0xff]
      %v763 = vld [vmem:[%s3 + $0xd8] sm:$0xff]
      %v764 = vld [vmem:[%s3 + $0xe0] sm:$0xff]
      %v765 = vld [vmem:[%s3 + $0xe8] sm:$0xff]
      %v766 = vld [vmem:[%s3 + $0xf0] sm:$0xff]
      %v767 = vld [vmem:[%s3 + $0xf8] sm:$0xff]
      %v768 = vld [vmem:[%s3 + $0x100] sm:$0xff]
      %v769 = vld [vmem:[%s3 + $0x108] sm:$0xff]
      %v770 = vld [vmem:[%s3 + $0x110] sm:$0xff]
      %v771 = vld [vmem:[%s3 + $0x118] sm:$0xff]
      %v772 = vld [vmem:[%s3 + $0x120] sm:$0xff]
      %v773 = vld [vmem:[%s3 + $0x128] sm:$0xff]
      %v774 = vld [vmem:[%s3 + $0x130] sm:$0xff]
      %v775 = vld [vmem:[%s3 + $0x138] sm:$0xff]
      %v776 = vld [vmem:[%s3 + $0x140] sm:$0xff]
      %v777 = vld [vmem:[%s3 + $0x148] sm:$0xff]
      %v778 = vld [vmem:[%s3 + $0x150] sm:$0xff]
      %v779 = vld [vmem:[%s3 + $0x158] sm:$0xff]
      %v780 = vld [vmem:[%s3 + $0x160] sm:$0xff]
      %v781 = vld [vmem:[%s3 + $0x168] sm:$0xff]
      %v782 = vld [vmem:[%s3 + $0x170] sm:$0xff]
      %v783 = vld [vmem:[%s3 + $0x178] sm:$0xff]
      %v784 = vld [vmem:[%s3 + $0x180] sm:$0xff]
      %v785 = vld [vmem:[%s3 + $0x188] sm:$0xff]
      %v786 = vld [vmem:[%s3 + $0x190] sm:$0xff]
      %v787 = vld [vmem:[%s3 + $0x198] sm:$0xff]
      %v788 = vld [vmem:[%s3 + $0x1a0] sm:$0xff]
      %v789 = vld [vmem:[%s3 + $0x1a8] sm:$0xff]
      %v790 = vld [vmem:[%s3 + $0x1b0] sm:$0xff]
      %v791 = vld [vmem:[%s3 + $0x1b8] sm:$0xff]
      %v792 = vld [vmem:[%s3 + $0x1c0] sm:$0xff]
      %v793 = vld [vmem:[%s3 + $0x1c8] sm:$0xff]
      %v794 = vld [vmem:[%s3 + $0x1d0] sm:$0xff]
      %v795 = vld [vmem:[%s3 + $0x1d8] sm:$0xff]
      %v796 = vld [vmem:[%s3 + $0x1e0] sm:$0xff]
      %v797 = vld [vmem:[%s3 + $0x1e8] sm:$0xff]
      %v798 = vld [vmem:[%s3 + $0x1f0] sm:$0xff]
      %v799 = vld [vmem:[%s3 + $0x1f8] sm:$0xff]
      %v800 = vld [vmem:[%s3 + $0x200] sm:$0xff]
      %v801 = vld [vmem:[%s3 + $0x208] sm:$0xff]
      %v802 = vld [vmem:[%s3 + $0x210] sm:$0xff]
      %v803 = vld [vmem:[%s3 + $0x218] sm:$0xff]
      %v804 = vld [vmem:[%s3 + $0x220] sm:$0xff]
      %v805 = vld [vmem:[%s3 + $0x228] sm:$0xff]
      %v806 = vld [vmem:[%s3 + $0x230] sm:$0xff]
      %v807 = vld [vmem:[%s3 + $0x238] sm:$0xff]
      %v808 = vld [vmem:[%s3 + $0x240] sm:$0xff]
      %v809 = vld [vmem:[%s3 + $0x248] sm:$0xff]
      %v810 = vld [vmem:[%s3 + $0x250] sm:$0xff]
      %v811 = vld [vmem:[%s3 + $0x258] sm:$0xff]
      %v812 = vld [vmem:[%s3 + $0x260] sm:$0xff]
      %v813 = vld [vmem:[%s3 + $0x268] sm:$0xff]
      %v814 = vld [vmem:[%s3 + $0x270] sm:$0xff]
      %v815 = vld [vmem:[%s3 + $0x278] sm:$0xff]
      %v816 = vld [vmem:[%s3 + $0x280] sm:$0xff]
      %v817 = vld [vmem:[%s3 + $0x288] sm:$0xff]
      %v818 = vld [vmem:[%s3 + $0x290] sm:$0xff]
      %v819 = vld [vmem:[%s3 + $0x298] sm:$0xff]
      %v820 = vld [vmem:[%s3 + $0x2a0] sm:$0xff]
      %v821 = vld [vmem:[%s3 + $0x2a8] sm:$0xff]
      %v822 = vld [vmem:[%s3 + $0x2b0] sm:$0xff]
      %v823 = vld [vmem:[%s3 + $0x2b8] sm:$0xff]
      %v824 = vld [vmem:[%s3 + $0x2c0] sm:$0xff]
      %v825 = vld [vmem:[%s3 + $0x2c8] sm:$0xff]
      %v826 = vld [vmem:[%s3 + $0x2d0] sm:$0xff]
      %v827 = vld [vmem:[%s3 + $0x2d8] sm:$0xff]
      %v828 = vld [vmem:[%s3 + $0x2e0] sm:$0xff]
      %v829 = vld [vmem:[%s3 + $0x2e8] sm:$0xff]
      %v830 = vld [vmem:[%s3 + $0x2f0] sm:$0xff]
      %v831 = vld [vmem:[%s3 + $0x2f8] sm:$0xff]
      %v832 = vld [vmem:[%s3 + $0x300] sm:$0xff]
      %v833 = vld [vmem:[%s3 + $0x308] sm:$0xff]
      %v834 = vld [vmem:[%s3 + $0x310] sm:$0xff]
      %v835 = vld [vmem:[%s3 + $0x318] sm:$0xff]
      %v836 = vld [vmem:[%s3 + $0x320] sm:$0xff]
      %v837 = vld [vmem:[%s3 + $0x328] sm:$0xff]
      %v838 = vld [vmem:[%s3 + $0x330] sm:$0xff]
      %v839 = vld [vmem:[%s3 + $0x338] sm:$0xff]
      %v840 = vld [vmem:[%s3 + $0x340] sm:$0xff]
      %v841 = vld [vmem:[%s3 + $0x348] sm:$0xff]
      %v842 = vld [vmem:[%s3 + $0x350] sm:$0xff]
      %v843 = vld [vmem:[%s3 + $0x358] sm:$0xff]
      %v844 = vld [vmem:[%s3 + $0x360] sm:$0xff]
      %v845 = vld [vmem:[%s3 + $0x368] sm:$0xff]
      %v846 = vld [vmem:[%s3 + $0x370] sm:$0xff]
      %v847 = vld [vmem:[%s3 + $0x378] sm:$0xff]
      %v848 = vld [vmem:[%s3 + $0x380] sm:$0xff]
      %v849 = vld [vmem:[%s3 + $0x388] sm:$0xff]
      %v850 = vld [vmem:[%s3 + $0x390] sm:$0xff]
      %v851 = vld [vmem:[%s3 + $0x398] sm:$0xff]
      %v852 = vld [vmem:[%s3 + $0x3a0] sm:$0xff]
      %v853 = vld [vmem:[%s3 + $0x3a8] sm:$0xff]
      %v854 = vld [vmem:[%s3 + $0x3b0] sm:$0xff]
      %v855 = vld [vmem:[%s3 + $0x3b8] sm:$0xff]
      %v856 = vld [vmem:[%s3 + $0x3c0] sm:$0xff]
      %v857 = vld [vmem:[%s3 + $0x3c8] sm:$0xff]
      %v858 = vld [vmem:[%s3 + $0x3d0] sm:$0xff]
      %v859 = vld [vmem:[%s3 + $0x3d8] sm:$0xff]
      %v860 = vld [vmem:[%s3 + $0x3e0] sm:$0xff]
      %v861 = vld [vmem:[%s3 + $0x3e8] sm:$0xff]
      %v862 = vld [vmem:[%s3 + $0x3f0] sm:$0xff]
      %v863 = vld [vmem:[%s3 + $0x3f8] sm:$0xff]
      %v864 = vld [vmem:[%s3 + $0x400] sm:$0xff]
      %v865 = vld [vmem:[%s3 + $0x408] sm:$0xff]
      %v866 = vld [vmem:[%s3 + $0x410] sm:$0xff]
      %v867 = vld [vmem:[%s3 + $0x418] sm:$0xff]
      %v868 = vld [vmem:[%s3 + $0x420] sm:$0xff]
      %v869 = vld [vmem:[%s3 + $0x428] sm:$0xff]
      %v870 = vld [vmem:[%s3 + $0x430] sm:$0xff]
      %v871 = vld [vmem:[%s3 + $0x438] sm:$0xff]
      %v872 = vld [vmem:[%s3 + $0x440] sm:$0xff]
      %v873 = vld [vmem:[%s3 + $0x448] sm:$0xff]
      %v874 = vld [vmem:[%s3 + $0x450] sm:$0xff]
      %v875 = vld [vmem:[%s3 + $0x458] sm:$0xff]
      %v876 = vld [vmem:[%s3 + $0x460] sm:$0xff]
      %v877 = vld [vmem:[%s3 + $0x468] sm:$0xff]
      %v878 = vld [vmem:[%s3 + $0x470] sm:$0xff]
      %v879 = vld [vmem:[%s3 + $0x478] sm:$0xff]
      %v880 = vld [vmem:[%s3 + $0x480] sm:$0xff]
      %v881 = vld [vmem:[%s3 + $0x488] sm:$0xff]
      %v882 = vld [vmem:[%s3 + $0x490] sm:$0xff]
      %v883 = vld [vmem:[%s3 + $0x498] sm:$0xff]
      %v884 = vld [vmem:[%s3 + $0x4a0] sm:$0xff]
      %v885 = vld [vmem:[%s3 + $0x4a8] sm:$0xff]
      %v886 = vld [vmem:[%s3 + $0x4b0] sm:$0xff]
      %v887 = vld [vmem:[%s3 + $0x4b8] sm:$0xff]
      %v888 = vld [vmem:[%s3 + $0x4c0] sm:$0xff]
      %v889 = vld [vmem:[%s3 + $0x4c8] sm:$0xff]
      %v890 = vld [vmem:[%s3 + $0x4d0] sm:$0xff]
      %v891 = vld [vmem:[%s3 + $0x4d8] sm:$0xff]
      %v892 = vld [vmem:[%s3 + $0x4e0] sm:$0xff]
      %v893 = vld [vmem:[%s3 + $0x4e8] sm:$0xff]
      %v894 = vld [vmem:[%s3 + $0x4f0] sm:$0xff]
      %v895 = vld [vmem:[%s3 + $0x4f8] sm:$0xff]
      %v896 = vld [vmem:[%s3 + $0x500] sm:$0xff]
      %v897 = vld [vmem:[%s3 + $0x508] sm:$0xff]
      %v898 = vld [vmem:[%s3 + $0x510] sm:$0xff]
      %v899 = vld [vmem:[%s3 + $0x518] sm:$0xff]
      %v900 = vld [vmem:[%s3 + $0x520] sm:$0xff]
      %v901 = vld [vmem:[%s3 + $0x528] sm:$0xff]
      %v902 = vld [vmem:[%s3 + $0x530] sm:$0xff]
      %v903 = vld [vmem:[%s3 + $0x538] sm:$0xff]
      %v904 = vld [vmem:[%s3 + $0x540] sm:$0xff]
      %v905 = vld [vmem:[%s3 + $0x548] sm:$0xff]
      %v906 = vld [vmem:[%s3 + $0x550] sm:$0xff]
      %v907 = vld [vmem:[%s3 + $0x558] sm:$0xff]
      %v908 = vld [vmem:[%s3 + $0x560] sm:$0xff]
      %v909 = vld [vmem:[%s3 + $0x568] sm:$0xff]
      %v910 = vld [vmem:[%s3 + $0x570] sm:$0xff]
      %v911 = vld [vmem:[%s3 + $0x578] sm:$0xff]
      %v912 = vld [vmem:[%s3 + $0x580] sm:$0xff]
      %v913 = vld [vmem:[%s3 + $0x588] sm:$0xff]
      %v914 = vld [vmem:[%s3 + $0x590] sm:$0xff]
      %v915 = vld [vmem:[%s3 + $0x598] sm:$0xff]
      %v916 = vld [vmem:[%s3 + $0x5a0] sm:$0xff]
      %v917 = vld [vmem:[%s3 + $0x5a8] sm:$0xff]
      %v918 = vld [vmem:[%s3 + $0x5b0] sm:$0xff]
      %v919 = vld [vmem:[%s3 + $0x5b8] sm:$0xff]
      %v920 = vld [vmem:[%s3 + $0x5c0] sm:$0xff]
      %v921 = vld [vmem:[%s3 + $0x5c8] sm:$0xff]
      %v922 = vld [vmem:[%s3 + $0x5d0] sm:$0xff]
      %v923 = vld [vmem:[%s3 + $0x5d8] sm:$0xff]
      %v924 = vld [vmem:[%s3 + $0x5e0] sm:$0xff]
      %v925 = vld [vmem:[%s3 + $0x5e8] sm:$0xff]
      %v926 = vld [vmem:[%s3 + $0x5f0] sm:$0xff]
      %v927 = vld [vmem:[%s3 + $0x5f8] sm:$0xff]
      %v928 = vld [vmem:[%s3 + $0x600] sm:$0xff]
      %v929 = vld [vmem:[%s3 + $0x608] sm:$0xff]
      %v930 = vld [vmem:[%s3 + $0x610] sm:$0xff]
      %v931 = vld [vmem:[%s3 + $0x618] sm:$0xff]
      %v932 = vld [vmem:[%s3 + $0x620] sm:$0xff]
      %v933 = vld [vmem:[%s3 + $0x628] sm:$0xff]
      %v934 = vld [vmem:[%s3 + $0x630] sm:$0xff]
      %v935 = vld [vmem:[%s3 + $0x638] sm:$0xff]
      %v936 = vld [vmem:[%s3 + $0x640] sm:$0xff]
      %v937 = vld [vmem:[%s3 + $0x648] sm:$0xff]
      %v938 = vld [vmem:[%s3 + $0x650] sm:$0xff]
      %v939 = vld [vmem:[%s3 + $0x658] sm:$0xff]
      %v940 = vld [vmem:[%s3 + $0x660] sm:$0xff]
      %v941 = vld [vmem:[%s3 + $0x668] sm:$0xff]
      %v942 = vld [vmem:[%s3 + $0x670] sm:$0xff]
      %v943 = vld [vmem:[%s3 + $0x678] sm:$0xff]
      %v944 = vld [vmem:[%s3 + $0x680] sm:$0xff]
      %v945 = vld [vmem:[%s3 + $0x688] sm:$0xff]
      %v946 = vld [vmem:[%s3 + $0x690] sm:$0xff]
      %v947 = vld [vmem:[%s3 + $0x698] sm:$0xff]
      %v948 = vld [vmem:[%s3 + $0x6a0] sm:$0xff]
      %v949 = vld [vmem:[%s3 + $0x6a8] sm:$0xff]
      %v950 = vld [vmem:[%s3 + $0x6b0] sm:$0xff]
      %v951 = vld [vmem:[%s3 + $0x6b8] sm:$0xff]
      %v952 = vld [vmem:[%s3 + $0x6c0] sm:$0xff]
      %v953 = vld [vmem:[%s3 + $0x6c8] sm:$0xff]
      %v954 = vld [vmem:[%s3 + $0x6d0] sm:$0xff]
      %v955 = vld [vmem:[%s3 + $0x6d8] sm:$0xff]
      %v956 = vld [vmem:[%s3 + $0x6e0] sm:$0xff]
      %v957 = vld [vmem:[%s3 + $0x6e8] sm:$0xff]
      %v958 = vld [vmem:[%s3 + $0x6f0] sm:$0xff]
      %v959 = vld [vmem:[%s3 + $0x6f8] sm:$0xff]
      %v960 = vld [vmem:[%s3 + $0x700] sm:$0xff]
      %v961 = vld [vmem:[%s3 + $0x708] sm:$0xff]
      %v962 = vld [vmem:[%s3 + $0x710] sm:$0xff]
      %v963 = vld [vmem:[%s3 + $0x718] sm:$0xff]
      %v964 = vld [vmem:[%s3 + $0x720] sm:$0xff]
      %v965 = vld [vmem:[%s3 + $0x728] sm:$0xff]
      %v966 = vld [vmem:[%s3 + $0x730] sm:$0xff]
      %v967 = vld [vmem:[%s3 + $0x738] sm:$0xff]
      %v968 = vld [vmem:[%s3 + $0x740] sm:$0xff]
      %v969 = vld [vmem:[%s3 + $0x748] sm:$0xff]
      %v970 = vld [vmem:[%s3 + $0x750] sm:$0xff]
      %v971 = vld [vmem:[%s3 + $0x758] sm:$0xff]
      %v972 = vld [vmem:[%s3 + $0x760] sm:$0xff]
      %v973 = vld [vmem:[%s3 + $0x768] sm:$0xff]
      %v974 = vld [vmem:[%s3 + $0x770] sm:$0xff]
      %v975 = vld [vmem:[%s3 + $0x778] sm:$0xff]
      %v976 = vld [vmem:[%s3 + $0x780] sm:$0xff]
      %v977 = vld [vmem:[%s3 + $0x788] sm:$0xff]
      %v978 = vld [vmem:[%s3 + $0x790] sm:$0xff]
      %v979 = vld [vmem:[%s3 + $0x798] sm:$0xff]
      %v980 = vld [vmem:[%s3 + $0x7a0] sm:$0xff]
      %v981 = vld [vmem:[%s3 + $0x7a8] sm:$0xff]
      %v982 = vld [vmem:[%s3 + $0x7b0] sm:$0xff]
      %v983 = vld [vmem:[%s3 + $0x7b8] sm:$0xff]
      %v984 = vld [vmem:[%s3 + $0x7c0] sm:$0xff]
      %v985 = vld [vmem:[%s3 + $0x7c8] sm:$0xff]
      %v986 = vld [vmem:[%s3 + $0x7d0] sm:$0xff]
      %v987 = vld [vmem:[%s3 + $0x7d8] sm:$0xff]
      %v988 = vld [vmem:[%s3 + $0x7e0] sm:$0xff]
      %v989 = vld [vmem:[%s3 + $0x7e8] sm:$0xff]
      %v990 = vld [vmem:[%s3 + $0x7f0] sm:$0xff]
      %v991 = vld [vmem:[%s3 + $0x7f8] sm:$0xff]
      %v992 = vld [vmem:[%s4] sm:$0xf]
      %v994 = vlaneseq
      %v995 = vshrl.u32 %v994, 7
      %v996 = vsub.s32 0, %v995
      %v997 = vrot.slane %v992, %v996
      %v998 = vlaneseq
      %v999 = vshrl.u32 %v998, 7
      %v1000 = vsub.s32 1, %v999
      %v1001 = vrot.slane %v992, %v1000
      %v1002 = vlaneseq
      %v1003 = vshrl.u32 %v1002, 7
      %v1004 = vsub.s32 2, %v1003
      %v1005 = vrot.slane %v992, %v1004
      %v1006 = vlaneseq
      %v1007 = vshrl.u32 %v1006, 7
      %v1008 = vsub.s32 3, %v1007
      %v1009 = vrot.slane %v992, %v1008
      %v1270 = vunpack.c.l.b16 %v736
      %v1271 = vunpack.c.h.b16 %v736
      %v1272 = vunpack.c.l.b16 %v737
      %v1273 = vunpack.c.h.b16 %v737
      %v1274 = vunpack.c.l.b16 %v738
      %v1275 = vunpack.c.h.b16 %v738
      %v1276 = vunpack.c.l.b16 %v739
      %v1277 = vunpack.c.h.b16 %v739
      %v1278 = vunpack.c.l.b16 %v740
      %v1279 = vunpack.c.h.b16 %v740
      %v1280 = vunpack.c.l.b16 %v741
      %v1281 = vunpack.c.h.b16 %v741
      %v1282 = vunpack.c.l.b16 %v742
      %v1283 = vunpack.c.h.b16 %v742
      %v1284 = vunpack.c.l.b16 %v743
      %v1285 = vunpack.c.h.b16 %v743
      %v1286 = vunpack.c.l.b16 %v744
      %v1287 = vunpack.c.h.b16 %v744
      %v1288 = vunpack.c.l.b16 %v745
      %v1289 = vunpack.c.h.b16 %v745
      %v1290 = vunpack.c.l.b16 %v746
      %v1291 = vunpack.c.h.b16 %v746
      %v1292 = vunpack.c.l.b16 %v747
      %v1293 = vunpack.c.h.b16 %v747
      %v1294 = vunpack.c.l.b16 %v748
      %v1295 = vunpack.c.h.b16 %v748
      %v1296 = vunpack.c.l.b16 %v749
      %v1297 = vunpack.c.h.b16 %v749
      %v1298 = vunpack.c.l.b16 %v750
      %v1299 = vunpack.c.h.b16 %v750
      %v1300 = vunpack.c.l.b16 %v751
      %v1301 = vunpack.c.h.b16 %v751
      %v1302 = vunpack.c.l.b16 %v752
      %v1303 = vunpack.c.h.b16 %v752
      %v1304 = vunpack.c.l.b16 %v753
      %v1305 = vunpack.c.h.b16 %v753
      %v1306 = vunpack.c.l.b16 %v754
      %v1307 = vunpack.c.h.b16 %v754
      %v1308 = vunpack.c.l.b16 %v755
      %v1309 = vunpack.c.h.b16 %v755
      %v1310 = vunpack.c.l.b16 %v756
      %v1311 = vunpack.c.h.b16 %v756
      %v1312 = vunpack.c.l.b16 %v757
      %v1313 = vunpack.c.h.b16 %v757
      %v1314 = vunpack.c.l.b16 %v758
      %v1315 = vunpack.c.h.b16 %v758
      %v1316 = vunpack.c.l.b16 %v759
      %v1317 = vunpack.c.h.b16 %v759
      %v1318 = vunpack.c.l.b16 %v760
      %v1319 = vunpack.c.h.b16 %v760
      %v1320 = vunpack.c.l.b16 %v761
      %v1321 = vunpack.c.h.b16 %v761
      %v1322 = vunpack.c.l.b16 %v762
      %v1323 = vunpack.c.h.b16 %v762
      %v1324 = vunpack.c.l.b16 %v763
      %v1325 = vunpack.c.h.b16 %v763
      %v1326 = vunpack.c.l.b16 %v764
      %v1327 = vunpack.c.h.b16 %v764
      %v1328 = vunpack.c.l.b16 %v765
      %v1329 = vunpack.c.h.b16 %v765
      %v1330 = vunpack.c.l.b16 %v766
      %v1331 = vunpack.c.h.b16 %v766
      %v1332 = vunpack.c.l.b16 %v767
      %v1333 = vunpack.c.h.b16 %v767
      %v1334 = vunpack.c.l.b16 %v768
      %v1335 = vunpack.c.h.b16 %v768
      %v1336 = vunpack.c.l.b16 %v769
      %v1337 = vunpack.c.h.b16 %v769
      %v1338 = vunpack.c.l.b16 %v770
      %v1339 = vunpack.c.h.b16 %v770
      %v1340 = vunpack.c.l.b16 %v771
      %v1341 = vunpack.c.h.b16 %v771
      %v1342 = vunpack.c.l.b16 %v772
      %v1343 = vunpack.c.h.b16 %v772
      %v1344 = vunpack.c.l.b16 %v773
      %v1345 = vunpack.c.h.b16 %v773
      %v1346 = vunpack.c.l.b16 %v774
      %v1347 = vunpack.c.h.b16 %v774
      %v1348 = vunpack.c.l.b16 %v775
      %v1349 = vunpack.c.h.b16 %v775
      %v1350 = vunpack.c.l.b16 %v776
      %v1351 = vunpack.c.h.b16 %v776
      %v1352 = vunpack.c.l.b16 %v777
      %v1353 = vunpack.c.h.b16 %v777
      %v1354 = vunpack.c.l.b16 %v778
      %v1355 = vunpack.c.h.b16 %v778
      %v1356 = vunpack.c.l.b16 %v779
      %v1357 = vunpack.c.h.b16 %v779
      %v1358 = vunpack.c.l.b16 %v780
      %v1359 = vunpack.c.h.b16 %v780
      %v1360 = vunpack.c.l.b16 %v781
      %v1361 = vunpack.c.h.b16 %v781
      %v1362 = vunpack.c.l.b16 %v782
      %v1363 = vunpack.c.h.b16 %v782
      %v1364 = vunpack.c.l.b16 %v783
      %v1365 = vunpack.c.h.b16 %v783
      %v1366 = vunpack.c.l.b16 %v784
      %v1367 = vunpack.c.h.b16 %v784
      %v1368 = vunpack.c.l.b16 %v785
      %v1369 = vunpack.c.h.b16 %v785
      %v1370 = vunpack.c.l.b16 %v786
      %v1371 = vunpack.c.h.b16 %v786
      %v1372 = vunpack.c.l.b16 %v787
      %v1373 = vunpack.c.h.b16 %v787
      %v1374 = vunpack.c.l.b16 %v788
      %v1375 = vunpack.c.h.b16 %v788
      %v1376 = vunpack.c.l.b16 %v789
      %v1377 = vunpack.c.h.b16 %v789
      %v1378 = vunpack.c.l.b16 %v790
      %v1379 = vunpack.c.h.b16 %v790
      %v1380 = vunpack.c.l.b16 %v791
      %v1381 = vunpack.c.h.b16 %v791
      %v1382 = vunpack.c.l.b16 %v792
      %v1383 = vunpack.c.h.b16 %v792
      %v1384 = vunpack.c.l.b16 %v793
      %v1385 = vunpack.c.h.b16 %v793
      %v1386 = vunpack.c.l.b16 %v794
      %v1387 = vunpack.c.h.b16 %v794
      %v1388 = vunpack.c.l.b16 %v795
      %v1389 = vunpack.c.h.b16 %v795
      %v1390 = vunpack.c.l.b16 %v796
      %v1391 = vunpack.c.h.b16 %v796
      %v1392 = vunpack.c.l.b16 %v797
      %v1393 = vunpack.c.h.b16 %v797
      %v1394 = vunpack.c.l.b16 %v798
      %v1395 = vunpack.c.h.b16 %v798
      %v1396 = vunpack.c.l.b16 %v799
      %v1397 = vunpack.c.h.b16 %v799
      %v1398 = vunpack.c.l.b16 %v800
      %v1399 = vunpack.c.h.b16 %v800
      %v1400 = vunpack.c.l.b16 %v801
      %v1401 = vunpack.c.h.b16 %v801
      %v1402 = vunpack.c.l.b16 %v802
      %v1403 = vunpack.c.h.b16 %v802
      %v1404 = vunpack.c.l.b16 %v803
      %v1405 = vunpack.c.h.b16 %v803
      %v1406 = vunpack.c.l.b16 %v804
      %v1407 = vunpack.c.h.b16 %v804
      %v1408 = vunpack.c.l.b16 %v805
      %v1409 = vunpack.c.h.b16 %v805
      %v1410 = vunpack.c.l.b16 %v806
      %v1411 = vunpack.c.h.b16 %v806
      %v1412 = vunpack.c.l.b16 %v807
      %v1413 = vunpack.c.h.b16 %v807
      %v1414 = vunpack.c.l.b16 %v808
      %v1415 = vunpack.c.h.b16 %v808
      %v1416 = vunpack.c.l.b16 %v809
      %v1417 = vunpack.c.h.b16 %v809
      %v1418 = vunpack.c.l.b16 %v810
      %v1419 = vunpack.c.h.b16 %v810
      %v1420 = vunpack.c.l.b16 %v811
      %v1421 = vunpack.c.h.b16 %v811
      %v1422 = vunpack.c.l.b16 %v812
      %v1423 = vunpack.c.h.b16 %v812
      %v1424 = vunpack.c.l.b16 %v813
      %v1425 = vunpack.c.h.b16 %v813
      %v1426 = vunpack.c.l.b16 %v814
      %v1427 = vunpack.c.h.b16 %v814
      %v1428 = vunpack.c.l.b16 %v815
      %v1429 = vunpack.c.h.b16 %v815
      %v1430 = vunpack.c.l.b16 %v816
      %v1431 = vunpack.c.h.b16 %v816
      %v1432 = vunpack.c.l.b16 %v817
      %v1433 = vunpack.c.h.b16 %v817
      %v1434 = vunpack.c.l.b16 %v818
      %v1435 = vunpack.c.h.b16 %v818
      %v1436 = vunpack.c.l.b16 %v819
      %v1437 = vunpack.c.h.b16 %v819
      %v1438 = vunpack.c.l.b16 %v820
      %v1439 = vunpack.c.h.b16 %v820
      %v1440 = vunpack.c.l.b16 %v821
      %v1441 = vunpack.c.h.b16 %v821
      %v1442 = vunpack.c.l.b16 %v822
      %v1443 = vunpack.c.h.b16 %v822
      %v1444 = vunpack.c.l.b16 %v823
      %v1445 = vunpack.c.h.b16 %v823
      %v1446 = vunpack.c.l.b16 %v824
      %v1447 = vunpack.c.h.b16 %v824
      %v1448 = vunpack.c.l.b16 %v825
      %v1449 = vunpack.c.h.b16 %v825
      %v1450 = vunpack.c.l.b16 %v826
      %v1451 = vunpack.c.h.b16 %v826
      %v1452 = vunpack.c.l.b16 %v827
      %v1453 = vunpack.c.h.b16 %v827
      %v1454 = vunpack.c.l.b16 %v828
      %v1455 = vunpack.c.h.b16 %v828
      %v1456 = vunpack.c.l.b16 %v829
      %v1457 = vunpack.c.h.b16 %v829
      %v1458 = vunpack.c.l.b16 %v830
      %v1459 = vunpack.c.h.b16 %v830
      %v1460 = vunpack.c.l.b16 %v831
      %v1461 = vunpack.c.h.b16 %v831
      %v1462 = vunpack.c.l.b16 %v832
      %v1463 = vunpack.c.h.b16 %v832
      %v1464 = vunpack.c.l.b16 %v833
      %v1465 = vunpack.c.h.b16 %v833
      %v1466 = vunpack.c.l.b16 %v834
      %v1467 = vunpack.c.h.b16 %v834
      %v1468 = vunpack.c.l.b16 %v835
      %v1469 = vunpack.c.h.b16 %v835
      %v1470 = vunpack.c.l.b16 %v836
      %v1471 = vunpack.c.h.b16 %v836
      %v1472 = vunpack.c.l.b16 %v837
      %v1473 = vunpack.c.h.b16 %v837
      %v1474 = vunpack.c.l.b16 %v838
      %v1475 = vunpack.c.h.b16 %v838
      %v1476 = vunpack.c.l.b16 %v839
      %v1477 = vunpack.c.h.b16 %v839
      %v1478 = vunpack.c.l.b16 %v840
      %v1479 = vunpack.c.h.b16 %v840
      %v1480 = vunpack.c.l.b16 %v841
      %v1481 = vunpack.c.h.b16 %v841
      %v1482 = vunpack.c.l.b16 %v842
      %v1483 = vunpack.c.h.b16 %v842
      %v1484 = vunpack.c.l.b16 %v843
      %v1485 = vunpack.c.h.b16 %v843
      %v1486 = vunpack.c.l.b16 %v844
      %v1487 = vunpack.c.h.b16 %v844
      %v1488 = vunpack.c.l.b16 %v845
      %v1489 = vunpack.c.h.b16 %v845
      %v1490 = vunpack.c.l.b16 %v846
      %v1491 = vunpack.c.h.b16 %v846
      %v1492 = vunpack.c.l.b16 %v847
      %v1493 = vunpack.c.h.b16 %v847
      %v1494 = vunpack.c.l.b16 %v848
      %v1495 = vunpack.c.h.b16 %v848
      %v1496 = vunpack.c.l.b16 %v849
      %v1497 = vunpack.c.h.b16 %v849
      %v1498 = vunpack.c.l.b16 %v850
      %v1499 = vunpack.c.h.b16 %v850
      %v1500 = vunpack.c.l.b16 %v851
      %v1501 = vunpack.c.h.b16 %v851
      %v1502 = vunpack.c.l.b16 %v852
      %v1503 = vunpack.c.h.b16 %v852
      %v1504 = vunpack.c.l.b16 %v853
      %v1505 = vunpack.c.h.b16 %v853
      %v1506 = vunpack.c.l.b16 %v854
      %v1507 = vunpack.c.h.b16 %v854
      %v1508 = vunpack.c.l.b16 %v855
      %v1509 = vunpack.c.h.b16 %v855
      %v1510 = vunpack.c.l.b16 %v856
      %v1511 = vunpack.c.h.b16 %v856
      %v1512 = vunpack.c.l.b16 %v857
      %v1513 = vunpack.c.h.b16 %v857
      %v1514 = vunpack.c.l.b16 %v858
      %v1515 = vunpack.c.h.b16 %v858
      %v1516 = vunpack.c.l.b16 %v859
      %v1517 = vunpack.c.h.b16 %v859
      %v1518 = vunpack.c.l.b16 %v860
      %v1519 = vunpack.c.h.b16 %v860
      %v1520 = vunpack.c.l.b16 %v861
      %v1521 = vunpack.c.h.b16 %v861
      %v1522 = vunpack.c.l.b16 %v862
      %v1523 = vunpack.c.h.b16 %v862
      %v1524 = vunpack.c.l.b16 %v863
      %v1525 = vunpack.c.h.b16 %v863
      %v1526 = vunpack.c.l.b16 %v864
      %v1527 = vunpack.c.h.b16 %v864
      %v1528 = vunpack.c.l.b16 %v865
      %v1529 = vunpack.c.h.b16 %v865
      %v1530 = vunpack.c.l.b16 %v866
      %v1531 = vunpack.c.h.b16 %v866
      %v1532 = vunpack.c.l.b16 %v867
      %v1533 = vunpack.c.h.b16 %v867
      %v1534 = vunpack.c.l.b16 %v868
      %v1535 = vunpack.c.h.b16 %v868
      %v1536 = vunpack.c.l.b16 %v869
      %v1537 = vunpack.c.h.b16 %v869
      %v1538 = vunpack.c.l.b16 %v870
      %v1539 = vunpack.c.h.b16 %v870
      %v1540 = vunpack.c.l.b16 %v871
      %v1541 = vunpack.c.h.b16 %v871
      %v1542 = vunpack.c.l.b16 %v872
      %v1543 = vunpack.c.h.b16 %v872
      %v1544 = vunpack.c.l.b16 %v873
      %v1545 = vunpack.c.h.b16 %v873
      %v1546 = vunpack.c.l.b16 %v874
      %v1547 = vunpack.c.h.b16 %v874
      %v1548 = vunpack.c.l.b16 %v875
      %v1549 = vunpack.c.h.b16 %v875
      %v1550 = vunpack.c.l.b16 %v876
      %v1551 = vunpack.c.h.b16 %v876
      %v1552 = vunpack.c.l.b16 %v877
      %v1553 = vunpack.c.h.b16 %v877
      %v1554 = vunpack.c.l.b16 %v878
      %v1555 = vunpack.c.h.b16 %v878
      %v1556 = vunpack.c.l.b16 %v879
      %v1557 = vunpack.c.h.b16 %v879
      %v1558 = vunpack.c.l.b16 %v880
      %v1559 = vunpack.c.h.b16 %v880
      %v1560 = vunpack.c.l.b16 %v881
      %v1561 = vunpack.c.h.b16 %v881
      %v1562 = vunpack.c.l.b16 %v882
      %v1563 = vunpack.c.h.b16 %v882
      %v1564 = vunpack.c.l.b16 %v883
      %v1565 = vunpack.c.h.b16 %v883
      %v1566 = vunpack.c.l.b16 %v884
      %v1567 = vunpack.c.h.b16 %v884
      %v1568 = vunpack.c.l.b16 %v885
      %v1569 = vunpack.c.h.b16 %v885
      %v1570 = vunpack.c.l.b16 %v886
      %v1571 = vunpack.c.h.b16 %v886
      %v1572 = vunpack.c.l.b16 %v887
      %v1573 = vunpack.c.h.b16 %v887
      %v1574 = vunpack.c.l.b16 %v888
      %v1575 = vunpack.c.h.b16 %v888
      %v1576 = vunpack.c.l.b16 %v889
      %v1577 = vunpack.c.h.b16 %v889
      %v1578 = vunpack.c.l.b16 %v890
      %v1579 = vunpack.c.h.b16 %v890
      %v1580 = vunpack.c.l.b16 %v891
      %v1581 = vunpack.c.h.b16 %v891
      %v1582 = vunpack.c.l.b16 %v892
      %v1583 = vunpack.c.h.b16 %v892
      %v1584 = vunpack.c.l.b16 %v893
      %v1585 = vunpack.c.h.b16 %v893
      %v1586 = vunpack.c.l.b16 %v894
      %v1587 = vunpack.c.h.b16 %v894
      %v1588 = vunpack.c.l.b16 %v895
      %v1589 = vunpack.c.h.b16 %v895
      %v1590 = vunpack.c.l.b16 %v896
      %v1591 = vunpack.c.h.b16 %v896
      %v1592 = vunpack.c.l.b16 %v897
      %v1593 = vunpack.c.h.b16 %v897
      %v1594 = vunpack.c.l.b16 %v898
      %v1595 = vunpack.c.h.b16 %v898
      %v1596 = vunpack.c.l.b16 %v899
      %v1597 = vunpack.c.h.b16 %v899
      %v1598 = vunpack.c.l.b16 %v900
      %v1599 = vunpack.c.h.b16 %v900
      %v1600 = vunpack.c.l.b16 %v901
      %v1601 = vunpack.c.h.b16 %v901
      %v1602 = vunpack.c.l.b16 %v902
      %v1603 = vunpack.c.h.b16 %v902
      %v1604 = vunpack.c.l.b16 %v903
      %v1605 = vunpack.c.h.b16 %v903
      %v1606 = vunpack.c.l.b16 %v904
      %v1607 = vunpack.c.h.b16 %v904
      %v1608 = vunpack.c.l.b16 %v905
      %v1609 = vunpack.c.h.b16 %v905
      %v1610 = vunpack.c.l.b16 %v906
      %v1611 = vunpack.c.h.b16 %v906
      %v1612 = vunpack.c.l.b16 %v907
      %v1613 = vunpack.c.h.b16 %v907
      %v1614 = vunpack.c.l.b16 %v908
      %v1615 = vunpack.c.h.b16 %v908
      %v1616 = vunpack.c.l.b16 %v909
      %v1617 = vunpack.c.h.b16 %v909
      %v1618 = vunpack.c.l.b16 %v910
      %v1619 = vunpack.c.h.b16 %v910
      %v1620 = vunpack.c.l.b16 %v911
      %v1621 = vunpack.c.h.b16 %v911
      %v1622 = vunpack.c.l.b16 %v912
      %v1623 = vunpack.c.h.b16 %v912
      %v1624 = vunpack.c.l.b16 %v913
      %v1625 = vunpack.c.h.b16 %v913
      %v1626 = vunpack.c.l.b16 %v914
      %v1627 = vunpack.c.h.b16 %v914
      %v1628 = vunpack.c.l.b16 %v915
      %v1629 = vunpack.c.h.b16 %v915
      %v1630 = vunpack.c.l.b16 %v916
      %v1631 = vunpack.c.h.b16 %v916
      %v1632 = vunpack.c.l.b16 %v917
      %v1633 = vunpack.c.h.b16 %v917
      %v1634 = vunpack.c.l.b16 %v918
      %v1635 = vunpack.c.h.b16 %v918
      %v1636 = vunpack.c.l.b16 %v919
      %v1637 = vunpack.c.h.b16 %v919
      %v1638 = vunpack.c.l.b16 %v920
      %v1639 = vunpack.c.h.b16 %v920
      %v1640 = vunpack.c.l.b16 %v921
      %v1641 = vunpack.c.h.b16 %v921
      %v1642 = vunpack.c.l.b16 %v922
      %v1643 = vunpack.c.h.b16 %v922
      %v1644 = vunpack.c.l.b16 %v923
      %v1645 = vunpack.c.h.b16 %v923
      %v1646 = vunpack.c.l.b16 %v924
      %v1647 = vunpack.c.h.b16 %v924
      %v1648 = vunpack.c.l.b16 %v925
      %v1649 = vunpack.c.h.b16 %v925
      %v1650 = vunpack.c.l.b16 %v926
      %v1651 = vunpack.c.h.b16 %v926
      %v1652 = vunpack.c.l.b16 %v927
      %v1653 = vunpack.c.h.b16 %v927
      %v1654 = vunpack.c.l.b16 %v928
      %v1655 = vunpack.c.h.b16 %v928
      %v1656 = vunpack.c.l.b16 %v929
      %v1657 = vunpack.c.h.b16 %v929
      %v1658 = vunpack.c.l.b16 %v930
      %v1659 = vunpack.c.h.b16 %v930
      %v1660 = vunpack.c.l.b16 %v931
      %v1661 = vunpack.c.h.b16 %v931
      %v1662 = vunpack.c.l.b16 %v932
      %v1663 = vunpack.c.h.b16 %v932
      %v1664 = vunpack.c.l.b16 %v933
      %v1665 = vunpack.c.h.b16 %v933
      %v1666 = vunpack.c.l.b16 %v934
      %v1667 = vunpack.c.h.b16 %v934
      %v1668 = vunpack.c.l.b16 %v935
      %v1669 = vunpack.c.h.b16 %v935
      %v1670 = vunpack.c.l.b16 %v936
      %v1671 = vunpack.c.h.b16 %v936
      %v1672 = vunpack.c.l.b16 %v937
      %v1673 = vunpack.c.h.b16 %v937
      %v1674 = vunpack.c.l.b16 %v938
      %v1675 = vunpack.c.h.b16 %v938
      %v1676 = vunpack.c.l.b16 %v939
      %v1677 = vunpack.c.h.b16 %v939
      %v1678 = vunpack.c.l.b16 %v940
      %v1679 = vunpack.c.h.b16 %v940
      %v1680 = vunpack.c.l.b16 %v941
      %v1681 = vunpack.c.h.b16 %v941
      %v1682 = vunpack.c.l.b16 %v942
      %v1683 = vunpack.c.h.b16 %v942
      %v1684 = vunpack.c.l.b16 %v943
      %v1685 = vunpack.c.h.b16 %v943
      %v1686 = vunpack.c.l.b16 %v944
      %v1687 = vunpack.c.h.b16 %v944
      %v1688 = vunpack.c.l.b16 %v945
      %v1689 = vunpack.c.h.b16 %v945
      %v1690 = vunpack.c.l.b16 %v946
      %v1691 = vunpack.c.h.b16 %v946
      %v1692 = vunpack.c.l.b16 %v947
      %v1693 = vunpack.c.h.b16 %v947
      %v1694 = vunpack.c.l.b16 %v948
      %v1695 = vunpack.c.h.b16 %v948
      %v1696 = vunpack.c.l.b16 %v949
      %v1697 = vunpack.c.h.b16 %v949
      %v1698 = vunpack.c.l.b16 %v950
      %v1699 = vunpack.c.h.b16 %v950
      %v1700 = vunpack.c.l.b16 %v951
      %v1701 = vunpack.c.h.b16 %v951
      %v1702 = vunpack.c.l.b16 %v952
      %v1703 = vunpack.c.h.b16 %v952
      %v1704 = vunpack.c.l.b16 %v953
      %v1705 = vunpack.c.h.b16 %v953
      %v1706 = vunpack.c.l.b16 %v954
      %v1707 = vunpack.c.h.b16 %v954
      %v1708 = vunpack.c.l.b16 %v955
      %v1709 = vunpack.c.h.b16 %v955
      %v1710 = vunpack.c.l.b16 %v956
      %v1711 = vunpack.c.h.b16 %v956
      %v1712 = vunpack.c.l.b16 %v957
      %v1713 = vunpack.c.h.b16 %v957
      %v1714 = vunpack.c.l.b16 %v958
      %v1715 = vunpack.c.h.b16 %v958
      %v1716 = vunpack.c.l.b16 %v959
      %v1717 = vunpack.c.h.b16 %v959
      %v1718 = vunpack.c.l.b16 %v960
      %v1719 = vunpack.c.h.b16 %v960
      %v1720 = vunpack.c.l.b16 %v961
      %v1721 = vunpack.c.h.b16 %v961
      %v1722 = vunpack.c.l.b16 %v962
      %v1723 = vunpack.c.h.b16 %v962
      %v1724 = vunpack.c.l.b16 %v963
      %v1725 = vunpack.c.h.b16 %v963
      %v1726 = vunpack.c.l.b16 %v964
      %v1727 = vunpack.c.h.b16 %v964
      %v1728 = vunpack.c.l.b16 %v965
      %v1729 = vunpack.c.h.b16 %v965
      %v1730 = vunpack.c.l.b16 %v966
      %v1731 = vunpack.c.h.b16 %v966
      %v1732 = vunpack.c.l.b16 %v967
      %v1733 = vunpack.c.h.b16 %v967
      %v1734 = vunpack.c.l.b16 %v968
      %v1735 = vunpack.c.h.b16 %v968
      %v1736 = vunpack.c.l.b16 %v969
      %v1737 = vunpack.c.h.b16 %v969
      %v1738 = vunpack.c.l.b16 %v970
      %v1739 = vunpack.c.h.b16 %v970
      %v1740 = vunpack.c.l.b16 %v971
      %v1741 = vunpack.c.h.b16 %v971
      %v1742 = vunpack.c.l.b16 %v972
      %v1743 = vunpack.c.h.b16 %v972
      %v1744 = vunpack.c.l.b16 %v973
      %v1745 = vunpack.c.h.b16 %v973
      %v1746 = vunpack.c.l.b16 %v974
      %v1747 = vunpack.c.h.b16 %v974
      %v1748 = vunpack.c.l.b16 %v975
      %v1749 = vunpack.c.h.b16 %v975
      %v1750 = vunpack.c.l.b16 %v976
      %v1751 = vunpack.c.h.b16 %v976
      %v1752 = vunpack.c.l.b16 %v977
      %v1753 = vunpack.c.h.b16 %v977
      %v1754 = vunpack.c.l.b16 %v978
      %v1755 = vunpack.c.h.b16 %v978
      %v1756 = vunpack.c.l.b16 %v979
      %v1757 = vunpack.c.h.b16 %v979
      %v1758 = vunpack.c.l.b16 %v980
      %v1759 = vunpack.c.h.b16 %v980
      %v1760 = vunpack.c.l.b16 %v981
      %v1761 = vunpack.c.h.b16 %v981
      %v1762 = vunpack.c.l.b16 %v982
      %v1763 = vunpack.c.h.b16 %v982
      %v1764 = vunpack.c.l.b16 %v983
      %v1765 = vunpack.c.h.b16 %v983
      %v1766 = vunpack.c.l.b16 %v984
      %v1767 = vunpack.c.h.b16 %v984
      %v1768 = vunpack.c.l.b16 %v985
      %v1769 = vunpack.c.h.b16 %v985
      %v1770 = vunpack.c.l.b16 %v986
      %v1771 = vunpack.c.h.b16 %v986
      %v1772 = vunpack.c.l.b16 %v987
      %v1773 = vunpack.c.h.b16 %v987
      %v1774 = vunpack.c.l.b16 %v988
      %v1775 = vunpack.c.h.b16 %v988
      %v1776 = vunpack.c.l.b16 %v989
      %v1777 = vunpack.c.h.b16 %v989
      %v1778 = vunpack.c.l.b16 %v990
      %v1779 = vunpack.c.h.b16 %v990
      %v1780 = vunpack.c.l.b16 %v991
      %v1781 = vunpack.c.h.b16 %v991
      %v1782 = vpack.c.b16 %v1274, %v1270
      %v1783 = vpack.c.b16 %v1275, %v1271
      %v1784 = vpack.c.b16 %v1276, %v1272
      %v1785 = vpack.c.b16 %v1277, %v1273
      %v1786 = vpack.c.b16 %v1282, %v1278
      %v1787 = vpack.c.b16 %v1283, %v1279
      %v1788 = vpack.c.b16 %v1284, %v1280
      %v1789 = vpack.c.b16 %v1285, %v1281
      %v1790 = vpack.c.b16 %v1290, %v1286
      %v1791 = vpack.c.b16 %v1291, %v1287
      %v1792 = vpack.c.b16 %v1292, %v1288
      %v1793 = vpack.c.b16 %v1293, %v1289
      %v1794 = vpack.c.b16 %v1298, %v1294
      %v1795 = vpack.c.b16 %v1299, %v1295
      %v1796 = vpack.c.b16 %v1300, %v1296
      %v1797 = vpack.c.b16 %v1301, %v1297
      %v1798 = vpack.c.b16 %v1306, %v1302
      %v1799 = vpack.c.b16 %v1307, %v1303
      %v1800 = vpack.c.b16 %v1308, %v1304
      %v1801 = vpack.c.b16 %v1309, %v1305
      %v1802 = vpack.c.b16 %v1314, %v1310
      %v1803 = vpack.c.b16 %v1315, %v1311
      %v1804 = vpack.c.b16 %v1316, %v1312
      %v1805 = vpack.c.b16 %v1317, %v1313
      %v1806 = vpack.c.b16 %v1322, %v1318
      %v1807 = vpack.c.b16 %v1323, %v1319
      %v1808 = vpack.c.b16 %v1324, %v1320
      %v1809 = vpack.c.b16 %v1325, %v1321
      %v1810 = vpack.c.b16 %v1330, %v1326
      %v1811 = vpack.c.b16 %v1331, %v1327
      %v1812 = vpack.c.b16 %v1332, %v1328
      %v1813 = vpack.c.b16 %v1333, %v1329
      %v1814 = vpack.c.b16 %v1338, %v1334
      %v1815 = vpack.c.b16 %v1339, %v1335
      %v1816 = vpack.c.b16 %v1340, %v1336
      %v1817 = vpack.c.b16 %v1341, %v1337
      %v1818 = vpack.c.b16 %v1346, %v1342
      %v1819 = vpack.c.b16 %v1347, %v1343
      %v1820 = vpack.c.b16 %v1348, %v1344
      %v1821 = vpack.c.b16 %v1349, %v1345
      %v1822 = vpack.c.b16 %v1354, %v1350
      %v1823 = vpack.c.b16 %v1355, %v1351
      %v1824 = vpack.c.b16 %v1356, %v1352
      %v1825 = vpack.c.b16 %v1357, %v1353
      %v1826 = vpack.c.b16 %v1362, %v1358
      %v1827 = vpack.c.b16 %v1363, %v1359
      %v1828 = vpack.c.b16 %v1364, %v1360
      %v1829 = vpack.c.b16 %v1365, %v1361
      %v1830 = vpack.c.b16 %v1370, %v1366
      %v1831 = vpack.c.b16 %v1371, %v1367
      %v1832 = vpack.c.b16 %v1372, %v1368
      %v1833 = vpack.c.b16 %v1373, %v1369
      %v1834 = vpack.c.b16 %v1378, %v1374
      %v1835 = vpack.c.b16 %v1379, %v1375
      %v1836 = vpack.c.b16 %v1380, %v1376
      %v1837 = vpack.c.b16 %v1381, %v1377
      %v1838 = vpack.c.b16 %v1386, %v1382
      %v1839 = vpack.c.b16 %v1387, %v1383
      %v1840 = vpack.c.b16 %v1388, %v1384
      %v1841 = vpack.c.b16 %v1389, %v1385
      %v1842 = vpack.c.b16 %v1394, %v1390
      %v1843 = vpack.c.b16 %v1395, %v1391
      %v1844 = vpack.c.b16 %v1396, %v1392
      %v1845 = vpack.c.b16 %v1397, %v1393
      %v1846 = vpack.c.b16 %v1402, %v1398
      %v1847 = vpack.c.b16 %v1403, %v1399
      %v1848 = vpack.c.b16 %v1404, %v1400
      %v1849 = vpack.c.b16 %v1405, %v1401
      %v1850 = vpack.c.b16 %v1410, %v1406
      %v1851 = vpack.c.b16 %v1411, %v1407
      %v1852 = vpack.c.b16 %v1412, %v1408
      %v1853 = vpack.c.b16 %v1413, %v1409
      %v1854 = vpack.c.b16 %v1418, %v1414
      %v1855 = vpack.c.b16 %v1419, %v1415
      %v1856 = vpack.c.b16 %v1420, %v1416
      %v1857 = vpack.c.b16 %v1421, %v1417
      %v1858 = vpack.c.b16 %v1426, %v1422
      %v1859 = vpack.c.b16 %v1427, %v1423
      %v1860 = vpack.c.b16 %v1428, %v1424
      %v1861 = vpack.c.b16 %v1429, %v1425
      %v1862 = vpack.c.b16 %v1434, %v1430
      %v1863 = vpack.c.b16 %v1435, %v1431
      %v1864 = vpack.c.b16 %v1436, %v1432
      %v1865 = vpack.c.b16 %v1437, %v1433
      %v1866 = vpack.c.b16 %v1442, %v1438
      %v1867 = vpack.c.b16 %v1443, %v1439
      %v1868 = vpack.c.b16 %v1444, %v1440
      %v1869 = vpack.c.b16 %v1445, %v1441
      %v1870 = vpack.c.b16 %v1450, %v1446
      %v1871 = vpack.c.b16 %v1451, %v1447
      %v1872 = vpack.c.b16 %v1452, %v1448
      %v1873 = vpack.c.b16 %v1453, %v1449
      %v1874 = vpack.c.b16 %v1458, %v1454
      %v1875 = vpack.c.b16 %v1459, %v1455
      %v1876 = vpack.c.b16 %v1460, %v1456
      %v1877 = vpack.c.b16 %v1461, %v1457
      %v1878 = vpack.c.b16 %v1466, %v1462
      %v1879 = vpack.c.b16 %v1467, %v1463
      %v1880 = vpack.c.b16 %v1468, %v1464
      %v1881 = vpack.c.b16 %v1469, %v1465
      %v1882 = vpack.c.b16 %v1474, %v1470
      %v1883 = vpack.c.b16 %v1475, %v1471
      %v1884 = vpack.c.b16 %v1476, %v1472
      %v1885 = vpack.c.b16 %v1477, %v1473
      %v1886 = vpack.c.b16 %v1482, %v1478
      %v1887 = vpack.c.b16 %v1483, %v1479
      %v1888 = vpack.c.b16 %v1484, %v1480
      %v1889 = vpack.c.b16 %v1485, %v1481
      %v1890 = vpack.c.b16 %v1490, %v1486
      %v1891 = vpack.c.b16 %v1491, %v1487
      %v1892 = vpack.c.b16 %v1492, %v1488
      %v1893 = vpack.c.b16 %v1493, %v1489
      %v1894 = vpack.c.b16 %v1498, %v1494
      %v1895 = vpack.c.b16 %v1499, %v1495
      %v1896 = vpack.c.b16 %v1500, %v1496
      %v1897 = vpack.c.b16 %v1501, %v1497
      %v1898 = vpack.c.b16 %v1506, %v1502
      %v1899 = vpack.c.b16 %v1507, %v1503
      %v1900 = vpack.c.b16 %v1508, %v1504
      %v1901 = vpack.c.b16 %v1509, %v1505
      %v1902 = vpack.c.b16 %v1514, %v1510
      %v1903 = vpack.c.b16 %v1515, %v1511
      %v1904 = vpack.c.b16 %v1516, %v1512
      %v1905 = vpack.c.b16 %v1517, %v1513
      %v1906 = vpack.c.b16 %v1522, %v1518
      %v1907 = vpack.c.b16 %v1523, %v1519
      %v1908 = vpack.c.b16 %v1524, %v1520
      %v1909 = vpack.c.b16 %v1525, %v1521
      %v1910 = vpack.c.b16 %v1530, %v1526
      %v1911 = vpack.c.b16 %v1531, %v1527
      %v1912 = vpack.c.b16 %v1532, %v1528
      %v1913 = vpack.c.b16 %v1533, %v1529
      %v1914 = vpack.c.b16 %v1538, %v1534
      %v1915 = vpack.c.b16 %v1539, %v1535
      %v1916 = vpack.c.b16 %v1540, %v1536
      %v1917 = vpack.c.b16 %v1541, %v1537
      %v1918 = vpack.c.b16 %v1546, %v1542
      %v1919 = vpack.c.b16 %v1547, %v1543
      %v1920 = vpack.c.b16 %v1548, %v1544
      %v1921 = vpack.c.b16 %v1549, %v1545
      %v1922 = vpack.c.b16 %v1554, %v1550
      %v1923 = vpack.c.b16 %v1555, %v1551
      %v1924 = vpack.c.b16 %v1556, %v1552
      %v1925 = vpack.c.b16 %v1557, %v1553
      %v1926 = vpack.c.b16 %v1562, %v1558
      %v1927 = vpack.c.b16 %v1563, %v1559
      %v1928 = vpack.c.b16 %v1564, %v1560
      %v1929 = vpack.c.b16 %v1565, %v1561
      %v1930 = vpack.c.b16 %v1570, %v1566
      %v1931 = vpack.c.b16 %v1571, %v1567
      %v1932 = vpack.c.b16 %v1572, %v1568
      %v1933 = vpack.c.b16 %v1573, %v1569
      %v1934 = vpack.c.b16 %v1578, %v1574
      %v1935 = vpack.c.b16 %v1579, %v1575
      %v1936 = vpack.c.b16 %v1580, %v1576
      %v1937 = vpack.c.b16 %v1581, %v1577
      %v1938 = vpack.c.b16 %v1586, %v1582
      %v1939 = vpack.c.b16 %v1587, %v1583
      %v1940 = vpack.c.b16 %v1588, %v1584
      %v1941 = vpack.c.b16 %v1589, %v1585
      %v1942 = vpack.c.b16 %v1594, %v1590
      %v1943 = vpack.c.b16 %v1595, %v1591
      %v1944 = vpack.c.b16 %v1596, %v1592
      %v1945 = vpack.c.b16 %v1597, %v1593
      %v1946 = vpack.c.b16 %v1602, %v1598
      %v1947 = vpack.c.b16 %v1603, %v1599
      %v1948 = vpack.c.b16 %v1604, %v1600
      %v1949 = vpack.c.b16 %v1605, %v1601
      %v1950 = vpack.c.b16 %v1610, %v1606
      %v1951 = vpack.c.b16 %v1611, %v1607
      %v1952 = vpack.c.b16 %v1612, %v1608
      %v1953 = vpack.c.b16 %v1613, %v1609
      %v1954 = vpack.c.b16 %v1618, %v1614
      %v1955 = vpack.c.b16 %v1619, %v1615
      %v1956 = vpack.c.b16 %v1620, %v1616
      %v1957 = vpack.c.b16 %v1621, %v1617
      %v1958 = vpack.c.b16 %v1626, %v1622
      %v1959 = vpack.c.b16 %v1627, %v1623
      %v1960 = vpack.c.b16 %v1628, %v1624
      %v1961 = vpack.c.b16 %v1629, %v1625
      %v1962 = vpack.c.b16 %v1634, %v1630
      %v1963 = vpack.c.b16 %v1635, %v1631
      %v1964 = vpack.c.b16 %v1636, %v1632
      %v1965 = vpack.c.b16 %v1637, %v1633
      %v1966 = vpack.c.b16 %v1642, %v1638
      %v1967 = vpack.c.b16 %v1643, %v1639
      %v1968 = vpack.c.b16 %v1644, %v1640
      %v1969 = vpack.c.b16 %v1645, %v1641
      %v1970 = vpack.c.b16 %v1650, %v1646
      %v1971 = vpack.c.b16 %v1651, %v1647
      %v1972 = vpack.c.b16 %v1652, %v1648
      %v1973 = vpack.c.b16 %v1653, %v1649
      %v1974 = vpack.c.b16 %v1658, %v1654
      %v1975 = vpack.c.b16 %v1659, %v1655
      %v1976 = vpack.c.b16 %v1660, %v1656
      %v1977 = vpack.c.b16 %v1661, %v1657
      %v1978 = vpack.c.b16 %v1666, %v1662
      %v1979 = vpack.c.b16 %v1667, %v1663
      %v1980 = vpack.c.b16 %v1668, %v1664
      %v1981 = vpack.c.b16 %v1669, %v1665
      %v1982 = vpack.c.b16 %v1674, %v1670
      %v1983 = vpack.c.b16 %v1675, %v1671
      %v1984 = vpack.c.b16 %v1676, %v1672
      %v1985 = vpack.c.b16 %v1677, %v1673
      %v1986 = vpack.c.b16 %v1682, %v1678
      %v1987 = vpack.c.b16 %v1683, %v1679
      %v1988 = vpack.c.b16 %v1684, %v1680
      %v1989 = vpack.c.b16 %v1685, %v1681
      %v1990 = vpack.c.b16 %v1690, %v1686
      %v1991 = vpack.c.b16 %v1691, %v1687
      %v1992 = vpack.c.b16 %v1692, %v1688
      %v1993 = vpack.c.b16 %v1693, %v1689
      %v1994 = vpack.c.b16 %v1698, %v1694
      %v1995 = vpack.c.b16 %v1699, %v1695
      %v1996 = vpack.c.b16 %v1700, %v1696
      %v1997 = vpack.c.b16 %v1701, %v1697
      %v1998 = vpack.c.b16 %v1706, %v1702
      %v1999 = vpack.c.b16 %v1707, %v1703
      %v2000 = vpack.c.b16 %v1708, %v1704
      %v2001 = vpack.c.b16 %v1709, %v1705
      %v2002 = vpack.c.b16 %v1714, %v1710
      %v2003 = vpack.c.b16 %v1715, %v1711
      %v2004 = vpack.c.b16 %v1716, %v1712
      %v2005 = vpack.c.b16 %v1717, %v1713
      %v2006 = vpack.c.b16 %v1722, %v1718
      %v2007 = vpack.c.b16 %v1723, %v1719
      %v2008 = vpack.c.b16 %v1724, %v1720
      %v2009 = vpack.c.b16 %v1725, %v1721
      %v2010 = vpack.c.b16 %v1730, %v1726
      %v2011 = vpack.c.b16 %v1731, %v1727
      %v2012 = vpack.c.b16 %v1732, %v1728
      %v2013 = vpack.c.b16 %v1733, %v1729
      %v2014 = vpack.c.b16 %v1738, %v1734
      %v2015 = vpack.c.b16 %v1739, %v1735
      %v2016 = vpack.c.b16 %v1740, %v1736
      %v2017 = vpack.c.b16 %v1741, %v1737
      %v2018 = vpack.c.b16 %v1746, %v1742
      %v2019 = vpack.c.b16 %v1747, %v1743
      %v2020 = vpack.c.b16 %v1748, %v1744
      %v2021 = vpack.c.b16 %v1749, %v1745
      %v2022 = vpack.c.b16 %v1754, %v1750
      %v2023 = vpack.c.b16 %v1755, %v1751
      %v2024 = vpack.c.b16 %v1756, %v1752
      %v2025 = vpack.c.b16 %v1757, %v1753
      %v2026 = vpack.c.b16 %v1762, %v1758
      %v2027 = vpack.c.b16 %v1763, %v1759
      %v2028 = vpack.c.b16 %v1764, %v1760
      %v2029 = vpack.c.b16 %v1765, %v1761
      %v2030 = vpack.c.b16 %v1770, %v1766
      %v2031 = vpack.c.b16 %v1771, %v1767
      %v2032 = vpack.c.b16 %v1772, %v1768
      %v2033 = vpack.c.b16 %v1773, %v1769
      %v2034 = vpack.c.b16 %v1778, %v1774
      %v2035 = vpack.c.b16 %v1779, %v1775
      %v2036 = vpack.c.b16 %v1780, %v1776
      %v2037 = vpack.c.b16 %v1781, %v1777
      %2294 = vmatprep.subr.bf16.mxu0 %v1783
      %2295 = vmatpush1.bf16.msra.mxu0 %v1782
      %2296 = vmatprep.subr.bf16.mxu0 %v1787
      %2297 = vmatpush1.bf16.msra.mxu0 %v1786
      %2298 = vmatprep.subr.bf16.mxu0 %v1791
      %2299 = vmatpush1.bf16.msra.mxu0 %v1790
      %2300 = vmatprep.subr.bf16.mxu0 %v1795
      %2301 = vmatpush1.bf16.msra.mxu0 %v1794
      %2302 = vmatprep.subr.bf16.mxu0 %v1799
      %2303 = vmatpush1.bf16.msra.mxu0 %v1798
      %2304 = vmatprep.subr.bf16.mxu0 %v1803
      %2305 = vmatpush1.bf16.msra.mxu0 %v1802
      %2306 = vmatprep.subr.bf16.mxu0 %v1807
      %2307 = vmatpush1.bf16.msra.mxu0 %v1806
      %2308 = vmatprep.subr.bf16.mxu0 %v1811
      %2309 = vmatpush1.bf16.msra.mxu0 %v1810
      %2310 = vmatprep.subr.bf16.mxu0 %v1815
      %2311 = vmatpush1.bf16.msra.mxu0 %v1814
      %2312 = vmatprep.subr.bf16.mxu0 %v1819
      %2313 = vmatpush1.bf16.msra.mxu0 %v1818
      %2314 = vmatprep.subr.bf16.mxu0 %v1823
      %2315 = vmatpush1.bf16.msra.mxu0 %v1822
      %2316 = vmatprep.subr.bf16.mxu0 %v1827
      %2317 = vmatpush1.bf16.msra.mxu0 %v1826
      %2318 = vmatprep.subr.bf16.mxu0 %v1831
      %2319 = vmatpush1.bf16.msra.mxu0 %v1830
      %2320 = vmatprep.subr.bf16.mxu0 %v1835
      %2321 = vmatpush1.bf16.msra.mxu0 %v1834
      %2322 = vmatprep.subr.bf16.mxu0 %v1839
      %2323 = vmatpush1.bf16.msra.mxu0 %v1838
      %2324 = vmatprep.subr.bf16.mxu0 %v1843
      %2325 = vmatpush1.bf16.msra.mxu0 %v1842
      %2326 = vmatprep.mubr.bf16.mxu0 %v729
      %2327 = vmatmul.mubr.bf16.gmra.mrb[0].mxu0 %v728
      %v2328 = vpop.f32.mrb[0].mxu0
      %v2329 = vadd.f32 %v997, %v2328
      %v2330 = vpop.f32.mrb[0].mxu0
      %v2331 = vadd.f32 %v1001, %v2330
      %v2332 = vpop.f32.mrb[0].mxu0
      %v2333 = vadd.f32 %v997, %v2332
      %v2334 = vpop.f32.mrb[0].mxu0
      %v2335 = vadd.f32 %v1001, %v2334
      %2336 = vdwg.mxu0
      %2337 = vmatprep.subr.bf16.mxu0 %v1847
      %2338 = vmatpush1.bf16.msra.mxu0 %v1846
      %2339 = vmatprep.subr.bf16.mxu0 %v1851
      %2340 = vmatpush1.bf16.msra.mxu0 %v1850
      %2341 = vmatprep.subr.bf16.mxu0 %v1855
      %2342 = vmatpush1.bf16.msra.mxu0 %v1854
      %2343 = vmatprep.subr.bf16.mxu0 %v1859
      %2344 = vmatpush1.bf16.msra.mxu0 %v1858
      %2345 = vmatprep.subr.bf16.mxu0 %v1863
      %2346 = vmatpush1.bf16.msra.mxu0 %v1862
      %2347 = vmatprep.subr.bf16.mxu0 %v1867
      %2348 = vmatpush1.bf16.msra.mxu0 %v1866
      %2349 = vmatprep.subr.bf16.mxu0 %v1871
      %2350 = vmatpush1.bf16.msra.mxu0 %v1870
      %2351 = vmatprep.subr.bf16.mxu0 %v1875
      %2352 = vmatpush1.bf16.msra.mxu0 %v1874
      %2353 = vmatprep.subr.bf16.mxu0 %v1879
      %2354 = vmatpush1.bf16.msra.mxu0 %v1878
      %2355 = vmatprep.subr.bf16.mxu0 %v1883
      %2356 = vmatpush1.bf16.msra.mxu0 %v1882
      %2357 = vmatprep.subr.bf16.mxu0 %v1887
      %2358 = vmatpush1.bf16.msra.mxu0 %v1886
      %2359 = vmatprep.subr.bf16.mxu0 %v1891
      %2360 = vmatpush1.bf16.msra.mxu0 %v1890
      %2361 = vmatprep.subr.bf16.mxu0 %v1895
      %2362 = vmatpush1.bf16.msra.mxu0 %v1894
      %2363 = vmatprep.subr.bf16.mxu0 %v1899
      %2364 = vmatpush1.bf16.msra.mxu0 %v1898
      %2365 = vmatprep.subr.bf16.mxu0 %v1903
      %2366 = vmatpush1.bf16.msra.mxu0 %v1902
      %2367 = vmatprep.subr.bf16.mxu0 %v1907
      %2368 = vmatpush1.bf16.msra.mxu0 %v1906
      %2369 = vmatprep.mubr.bf16.mxu0 %v731
      %2370 = vmatmul.mubr.bf16.gmra.mrb[0].mxu0 %v730
      %v2371 = vpop.f32.mrb[0].mxu0
      %v2372 = vadd.f32 %v2329, %v2371
      %v2373 = vpop.f32.mrb[0].mxu0
      %v2374 = vadd.f32 %v2331, %v2373
      %v2375 = vpop.f32.mrb[0].mxu0
      %v2376 = vadd.f32 %v2333, %v2375
      %v2377 = vpop.f32.mrb[0].mxu0
      %v2378 = vadd.f32 %v2335, %v2377
      %2379 = vdwg.mxu0
      %2380 = vmatprep.subr.bf16.mxu0 %v1911
      %2381 = vmatpush1.bf16.msra.mxu0 %v1910
      %2382 = vmatprep.subr.bf16.mxu0 %v1915
      %2383 = vmatpush1.bf16.msra.mxu0 %v1914
      %2384 = vmatprep.subr.bf16.mxu0 %v1919
      %2385 = vmatpush1.bf16.msra.mxu0 %v1918
      %2386 = vmatprep.subr.bf16.mxu0 %v1923
      %2387 = vmatpush1.bf16.msra.mxu0 %v1922
      %2388 = vmatprep.subr.bf16.mxu0 %v1927
      %2389 = vmatpush1.bf16.msra.mxu0 %v1926
      %2390 = vmatprep.subr.bf16.mxu0 %v1931
      %2391 = vmatpush1.bf16.msra.mxu0 %v1930
      %2392 = vmatprep.subr.bf16.mxu0 %v1935
      %2393 = vmatpush1.bf16.msra.mxu0 %v1934
      %2394 = vmatprep.subr.bf16.mxu0 %v1939
      %2395 = vmatpush1.bf16.msra.mxu0 %v1938
      %2396 = vmatprep.subr.bf16.mxu0 %v1943
      %2397 = vmatpush1.bf16.msra.mxu0 %v1942
      %2398 = vmatprep.subr.bf16.mxu0 %v1947
      %2399 = vmatpush1.bf16.msra.mxu0 %v1946
      %2400 = vmatprep.subr.bf16.mxu0 %v1951
      %2401 = vmatpush1.bf16.msra.mxu0 %v1950
      %2402 = vmatprep.subr.bf16.mxu0 %v1955
      %2403 = vmatpush1.bf16.msra.mxu0 %v1954
      %2404 = vmatprep.subr.bf16.mxu0 %v1959
      %2405 = vmatpush1.bf16.msra.mxu0 %v1958
      %2406 = vmatprep.subr.bf16.mxu0 %v1963
      %2407 = vmatpush1.bf16.msra.mxu0 %v1962
      %2408 = vmatprep.subr.bf16.mxu0 %v1967
      %2409 = vmatpush1.bf16.msra.mxu0 %v1966
      %2410 = vmatprep.subr.bf16.mxu0 %v1971
      %2411 = vmatpush1.bf16.msra.mxu0 %v1970
      %2412 = vmatprep.mubr.bf16.mxu0 %v733
      %2413 = vmatmul.mubr.bf16.gmra.mrb[0].mxu0 %v732
      %v2414 = vpop.f32.mrb[0].mxu0
      %v2415 = vadd.f32 %v2372, %v2414
      %v2416 = vpop.f32.mrb[0].mxu0
      %v2417 = vadd.f32 %v2374, %v2416
      %v2418 = vpop.f32.mrb[0].mxu0
      %v2419 = vadd.f32 %v2376, %v2418
      %v2420 = vpop.f32.mrb[0].mxu0
      %v2421 = vadd.f32 %v2378, %v2420
      %2422 = vdwg.mxu0
      %2423 = vmatprep.subr.bf16.mxu0 %v1975
      %2424 = vmatpush1.bf16.msra.mxu0 %v1974
      %2425 = vmatprep.subr.bf16.mxu0 %v1979
      %2426 = vmatpush1.bf16.msra.mxu0 %v1978
      %2427 = vmatprep.subr.bf16.mxu0 %v1983
      %2428 = vmatpush1.bf16.msra.mxu0 %v1982
      %2429 = vmatprep.subr.bf16.mxu0 %v1987
      %2430 = vmatpush1.bf16.msra.mxu0 %v1986
      %2431 = vmatprep.subr.bf16.mxu0 %v1991
      %2432 = vmatpush1.bf16.msra.mxu0 %v1990
      %2433 = vmatprep.subr.bf16.mxu0 %v1995
      %2434 = vmatpush1.bf16.msra.mxu0 %v1994
      %2435 = vmatprep.subr.bf16.mxu0 %v1999
      %2436 = vmatpush1.bf16.msra.mxu0 %v1998
      %2437 = vmatprep.subr.bf16.mxu0 %v2003
      %2438 = vmatpush1.bf16.msra.mxu0 %v2002
      %2439 = vmatprep.subr.bf16.mxu0 %v2007
      %2440 = vmatpush1.bf16.msra.mxu0 %v2006
      %2441 = vmatprep.subr.bf16.mxu0 %v2011
      %2442 = vmatpush1.bf16.msra.mxu0 %v2010
      %2443 = vmatprep.subr.bf16.mxu0 %v2015
      %2444 = vmatpush1.bf16.msra.mxu0 %v2014
      %2445 = vmatprep.subr.bf16.mxu0 %v2019
      %2446 = vmatpush1.bf16.msra.mxu0 %v2018
      %2447 = vmatprep.subr.bf16.mxu0 %v2023
      %2448 = vmatpush1.bf16.msra.mxu0 %v2022
      %2449 = vmatprep.subr.bf16.mxu0 %v2027
      %2450 = vmatpush1.bf16.msra.mxu0 %v2026
      %2451 = vmatprep.subr.bf16.mxu0 %v2031
      %2452 = vmatpush1.bf16.msra.mxu0 %v2030
      %2453 = vmatprep.subr.bf16.mxu0 %v2035
      %2454 = vmatpush1.bf16.msra.mxu0 %v2034
      %2455 = vmatprep.mubr.bf16.mxu0 %v735
      %2456 = vmatmul.mubr.bf16.gmra.mrb[0].mxu0 %v734
      %v2457 = vpop.f32.mrb[0].mxu0
      %v2458 = vadd.f32 %v2415, %v2457
      %v2459 = vpop.f32.mrb[0].mxu0
      %v2460 = vadd.f32 %v2417, %v2459
      %v2461 = vpop.f32.mrb[0].mxu0
      %v2462 = vadd.f32 %v2419, %v2461
      %v2463 = vpop.f32.mrb[0].mxu0
      %v2464 = vadd.f32 %v2421, %v2463
      %2465 = vdwg.mxu0
      %2466 = vmatprep.subr.bf16.mxu0 %v1785
      %2467 = vmatpush1.bf16.msra.mxu0 %v1784
      %2468 = vmatprep.subr.bf16.mxu0 %v1789
      %2469 = vmatpush1.bf16.msra.mxu0 %v1788
      %2470 = vmatprep.subr.bf16.mxu0 %v1793
      %2471 = vmatpush1.bf16.msra.mxu0 %v1792
      %2472 = vmatprep.subr.bf16.mxu0 %v1797
      %2473 = vmatpush1.bf16.msra.mxu0 %v1796
      %2474 = vmatprep.subr.bf16.mxu0 %v1801
      %2475 = vmatpush1.bf16.msra.mxu0 %v1800
      %2476 = vmatprep.subr.bf16.mxu0 %v1805
      %2477 = vmatpush1.bf16.msra.mxu0 %v1804
      %2478 = vmatprep.subr.bf16.mxu0 %v1809
      %2479 = vmatpush1.bf16.msra.mxu0 %v1808
      %2480 = vmatprep.subr.bf16.mxu0 %v1813
      %2481 = vmatpush1.bf16.msra.mxu0 %v1812
      %2482 = vmatprep.subr.bf16.mxu0 %v1817
      %2483 = vmatpush1.bf16.msra.mxu0 %v1816
      %2484 = vmatprep.subr.bf16.mxu0 %v1821
      %2485 = vmatpush1.bf16.msra.mxu0 %v1820
      %2486 = vmatprep.subr.bf16.mxu0 %v1825
      %2487 = vmatpush1.bf16.msra.mxu0 %v1824
      %2488 = vmatprep.subr.bf16.mxu0 %v1829
      %2489 = vmatpush1.bf16.msra.mxu0 %v1828
      %2490 = vmatprep.subr.bf16.mxu0 %v1833
      %2491 = vmatpush1.bf16.msra.mxu0 %v1832
      %2492 = vmatprep.subr.bf16.mxu0 %v1837
      %2493 = vmatpush1.bf16.msra.mxu0 %v1836
      %2494 = vmatprep.subr.bf16.mxu0 %v1841
      %2495 = vmatpush1.bf16.msra.mxu0 %v1840
      %2496 = vmatprep.subr.bf16.mxu0 %v1845
      %2497 = vmatpush1.bf16.msra.mxu0 %v1844
      %2498 = vmatprep.mubr.bf16.mxu0 %v729
      %2499 = vmatmul.mubr.bf16.gmra.mrb[0].mxu0 %v728
      %v2500 = vpop.f32.mrb[0].mxu0
      %v2501 = vadd.f32 %v1005, %v2500
      %v2502 = vpop.f32.mrb[0].mxu0
      %v2503 = vadd.f32 %v1009, %v2502
      %v2504 = vpop.f32.mrb[0].mxu0
      %v2505 = vadd.f32 %v1005, %v2504
      %v2506 = vpop.f32.mrb[0].mxu0
      %v2507 = vadd.f32 %v1009, %v2506
      %2508 = vdwg.mxu0
      %2509 = vmatprep.subr.bf16.mxu0 %v1849
      %2510 = vmatpush1.bf16.msra.mxu0 %v1848
      %2511 = vmatprep.subr.bf16.mxu0 %v1853
      %2512 = vmatpush1.bf16.msra.mxu0 %v1852
      %2513 = vmatprep.subr.bf16.mxu0 %v1857
      %2514 = vmatpush1.bf16.msra.mxu0 %v1856
      %2515 = vmatprep.subr.bf16.mxu0 %v1861
      %2516 = vmatpush1.bf16.msra.mxu0 %v1860
      %2517 = vmatprep.subr.bf16.mxu0 %v1865
      %2518 = vmatpush1.bf16.msra.mxu0 %v1864
      %2519 = vmatprep.subr.bf16.mxu0 %v1869
      %2520 = vmatpush1.bf16.msra.mxu0 %v1868
      %2521 = vmatprep.subr.bf16.mxu0 %v1873
      %2522 = vmatpush1.bf16.msra.mxu0 %v1872
      %2523 = vmatprep.subr.bf16.mxu0 %v1877
      %2524 = vmatpush1.bf16.msra.mxu0 %v1876
      %2525 = vmatprep.subr.bf16.mxu0 %v1881
      %2526 = vmatpush1.bf16.msra.mxu0 %v1880
      %2527 = vmatprep.subr.bf16.mxu0 %v1885
      %2528 = vmatpush1.bf16.msra.mxu0 %v1884
      %2529 = vmatprep.subr.bf16.mxu0 %v1889
      %2530 = vmatpush1.bf16.msra.mxu0 %v1888
      %2531 = vmatprep.subr.bf16.mxu0 %v1893
      %2532 = vmatpush1.bf16.msra.mxu0 %v1892
      %2533 = vmatprep.subr.bf16.mxu0 %v1897
      %2534 = vmatpush1.bf16.msra.mxu0 %v1896
      %2535 = vmatprep.subr.bf16.mxu0 %v1901
      %2536 = vmatpush1.bf16.msra.mxu0 %v1900
      %2537 = vmatprep.subr.bf16.mxu0 %v1905
      %2538 = vmatpush1.bf16.msra.mxu0 %v1904
      %2539 = vmatprep.subr.bf16.mxu0 %v1909
      %2540 = vmatpush1.bf16.msra.mxu0 %v1908
      %2541 = vmatprep.mubr.bf16.mxu0 %v731
      %2542 = vmatmul.mubr.bf16.gmra.mrb[0].mxu0 %v730
      %v2543 = vpop.f32.mrb[0].mxu0
      %v2544 = vadd.f32 %v2501, %v2543
      %v2545 = vpop.f32.mrb[0].mxu0
      %v2546 = vadd.f32 %v2503, %v2545
      %v2547 = vpop.f32.mrb[0].mxu0
      %v2548 = vadd.f32 %v2505, %v2547
      %v2549 = vpop.f32.mrb[0].mxu0
      %v2550 = vadd.f32 %v2507, %v2549
      %2551 = vdwg.mxu0
      %2552 = vmatprep.subr.bf16.mxu0 %v1913
      %2553 = vmatpush1.bf16.msra.mxu0 %v1912
      %2554 = vmatprep.subr.bf16.mxu0 %v1917
      %2555 = vmatpush1.bf16.msra.mxu0 %v1916
      %2556 = vmatprep.subr.bf16.mxu0 %v1921
      %2557 = vmatpush1.bf16.msra.mxu0 %v1920
      %2558 = vmatprep.subr.bf16.mxu0 %v1925
      %2559 = vmatpush1.bf16.msra.mxu0 %v1924
      %2560 = vmatprep.subr.bf16.mxu0 %v1929
      %2561 = vmatpush1.bf16.msra.mxu0 %v1928
      %2562 = vmatprep.subr.bf16.mxu0 %v1933
      %2563 = vmatpush1.bf16.msra.mxu0 %v1932
      %2564 = vmatprep.subr.bf16.mxu0 %v1937
      %2565 = vmatpush1.bf16.msra.mxu0 %v1936
      %2566 = vmatprep.subr.bf16.mxu0 %v1941
      %2567 = vmatpush1.bf16.msra.mxu0 %v1940
      %2568 = vmatprep.subr.bf16.mxu0 %v1945
      %2569 = vmatpush1.bf16.msra.mxu0 %v1944
      %2570 = vmatprep.subr.bf16.mxu0 %v1949
      %2571 = vmatpush1.bf16.msra.mxu0 %v1948
      %2572 = vmatprep.subr.bf16.mxu0 %v1953
      %2573 = vmatpush1.bf16.msra.mxu0 %v1952
      %2574 = vmatprep.subr.bf16.mxu0 %v1957
      %2575 = vmatpush1.bf16.msra.mxu0 %v1956
      %2576 = vmatprep.subr.bf16.mxu0 %v1961
      %2577 = vmatpush1.bf16.msra.mxu0 %v1960
      %2578 = vmatprep.subr.bf16.mxu0 %v1965
      %2579 = vmatpush1.bf16.msra.mxu0 %v1964
      %2580 = vmatprep.subr.bf16.mxu0 %v1969
      %2581 = vmatpush1.bf16.msra.mxu0 %v1968
      %2582 = vmatprep.subr.bf16.mxu0 %v1973
      %2583 = vmatpush1.bf16.msra.mxu0 %v1972
      %2584 = vmatprep.mubr.bf16.mxu0 %v733
      %2585 = vmatmul.mubr.bf16.gmra.mrb[0].mxu0 %v732
      %v2586 = vpop.f32.mrb[0].mxu0
      %v2587 = vadd.f32 %v2544, %v2586
      %v2588 = vpop.f32.mrb[0].mxu0
      %v2589 = vadd.f32 %v2546, %v2588
      %v2590 = vpop.f32.mrb[0].mxu0
      %v2591 = vadd.f32 %v2548, %v2590
      %v2592 = vpop.f32.mrb[0].mxu0
      %v2593 = vadd.f32 %v2550, %v2592
      %2594 = vdwg.mxu0
      %2595 = vmatprep.subr.bf16.mxu0 %v1977
      %2596 = vmatpush1.bf16.msra.mxu0 %v1976
      %2597 = vmatprep.subr.bf16.mxu0 %v1981
      %2598 = vmatpush1.bf16.msra.mxu0 %v1980
      %2599 = vmatprep.subr.bf16.mxu0 %v1985
      %2600 = vmatpush1.bf16.msra.mxu0 %v1984
      %2601 = vmatprep.subr.bf16.mxu0 %v1989
      %2602 = vmatpush1.bf16.msra.mxu0 %v1988
      %2603 = vmatprep.subr.bf16.mxu0 %v1993
      %2604 = vmatpush1.bf16.msra.mxu0 %v1992
      %2605 = vmatprep.subr.bf16.mxu0 %v1997
      %2606 = vmatpush1.bf16.msra.mxu0 %v1996
      %2607 = vmatprep.subr.bf16.mxu0 %v2001
      %2608 = vmatpush1.bf16.msra.mxu0 %v2000
      %2609 = vmatprep.subr.bf16.mxu0 %v2005
      %2610 = vmatpush1.bf16.msra.mxu0 %v2004
      %2611 = vmatprep.subr.bf16.mxu0 %v2009
      %2612 = vmatpush1.bf16.msra.mxu0 %v2008
      %2613 = vmatprep.subr.bf16.mxu0 %v2013
      %2614 = vmatpush1.bf16.msra.mxu0 %v2012
      %2615 = vmatprep.subr.bf16.mxu0 %v2017
      %2616 = vmatpush1.bf16.msra.mxu0 %v2016
      %2617 = vmatprep.subr.bf16.mxu0 %v2021
      %2618 = vmatpush1.bf16.msra.mxu0 %v2020
      %2619 = vmatprep.subr.bf16.mxu0 %v2025
      %2620 = vmatpush1.bf16.msra.mxu0 %v2024
      %2621 = vmatprep.subr.bf16.mxu0 %v2029
      %2622 = vmatpush1.bf16.msra.mxu0 %v2028
      %2623 = vmatprep.subr.bf16.mxu0 %v2033
      %2624 = vmatpush1.bf16.msra.mxu0 %v2032
      %2625 = vmatprep.subr.bf16.mxu0 %v2037
      %2626 = vmatpush1.bf16.msra.mxu0 %v2036
      %2627 = vmatprep.mubr.bf16.mxu0 %v735
      %2628 = vmatmul.mubr.bf16.gmra.mrb[0].mxu0 %v734
      %v2629 = vpop.f32.mrb[0].mxu0
      %v2630 = vadd.f32 %v2587, %v2629
      %v2631 = vpop.f32.mrb[0].mxu0
      %v2632 = vadd.f32 %v2589, %v2631
      %v2633 = vpop.f32.mrb[0].mxu0
      %v2634 = vadd.f32 %v2591, %v2633
      %v2635 = vpop.f32.mrb[0].mxu0
      %v2636 = vadd.f32 %v2593, %v2635
      %2637 = vdwg.mxu0
      %v2638 = vtanh.pop %v2458
      %v2639 = vtanh.pop %v2460
      %v2640 = vtanh.pop %v2630
      %v2641 = vtanh.pop %v2632
      %v2642 = vtanh.pop %v2462
      %v2643 = vtanh.pop %v2464
      %v2644 = vtanh.pop %v2634
      %v2645 = vtanh.pop %v2636
      %v2646 = vpack.c.bf16 %v2642, %v2638
      %v2647 = vpack.c.bf16 %v2643, %v2639
      %v2648 = vpack.c.bf16 %v2644, %v2640
      %v2649 = vpack.c.bf16 %v2645, %v2641
      %v2650 = vld [vmem:[%s5] sm:$0xff]
      %v2651 = vld [vmem:[%s5 + $0x8] sm:$0xff]
      %v2652 = vld [vmem:[%s5 + $0x10] sm:$0xff]
      %v2653 = vld [vmem:[%s5 + $0x18] sm:$0xff]
      %v2654 = vld [vmem:[%s5 + $0x20] sm:$0xff]
      %v2655 = vld [vmem:[%s5 + $0x28] sm:$0xff]
      %v2656 = vld [vmem:[%s5 + $0x30] sm:$0xff]
      %v2657 = vld [vmem:[%s5 + $0x38] sm:$0xff]
      %v2658 = vld [vmem:[%s5 + $0x40] sm:$0xff]
      %v2659 = vld [vmem:[%s5 + $0x48] sm:$0xff]
      %v2660 = vld [vmem:[%s5 + $0x50] sm:$0xff]
      %v2661 = vld [vmem:[%s5 + $0x58] sm:$0xff]
      %v2662 = vld [vmem:[%s5 + $0x60] sm:$0xff]
      %v2663 = vld [vmem:[%s5 + $0x68] sm:$0xff]
      %v2664 = vld [vmem:[%s5 + $0x70] sm:$0xff]
      %v2665 = vld [vmem:[%s5 + $0x78] sm:$0xff]
      %v2666 = vld [vmem:[%s5 + $0x80] sm:$0xff]
      %v2667 = vld [vmem:[%s5 + $0x88] sm:$0xff]
      %v2668 = vld [vmem:[%s5 + $0x90] sm:$0xff]
      %v2669 = vld [vmem:[%s5 + $0x98] sm:$0xff]
      %v2670 = vld [vmem:[%s5 + $0xa0] sm:$0xff]
      %v2671 = vld [vmem:[%s5 + $0xa8] sm:$0xff]
      %v2672 = vld [vmem:[%s5 + $0xb0] sm:$0xff]
      %v2673 = vld [vmem:[%s5 + $0xb8] sm:$0xff]
      %v2674 = vld [vmem:[%s5 + $0xc0] sm:$0xff]
      %v2675 = vld [vmem:[%s5 + $0xc8] sm:$0xff]
      %v2676 = vld [vmem:[%s5 + $0xd0] sm:$0xff]
      %v2677 = vld [vmem:[%s5 + $0xd8] sm:$0xff]
      %v2678 = vld [vmem:[%s5 + $0xe0] sm:$0xff]
      %v2679 = vld [vmem:[%s5 + $0xe8] sm:$0xff]
      %v2680 = vld [vmem:[%s5 + $0xf0] sm:$0xff]
      %v2681 = vld [vmem:[%s5 + $0xf8] sm:$0xff]
      %v2682 = vld [vmem:[%s5 + $0x100] sm:$0xff]
      %v2683 = vld [vmem:[%s5 + $0x108] sm:$0xff]
      %v2684 = vld [vmem:[%s5 + $0x110] sm:$0xff]
      %v2685 = vld [vmem:[%s5 + $0x118] sm:$0xff]
      %v2686 = vld [vmem:[%s5 + $0x120] sm:$0xff]
      %v2687 = vld [vmem:[%s5 + $0x128] sm:$0xff]
      %v2688 = vld [vmem:[%s5 + $0x130] sm:$0xff]
      %v2689 = vld [vmem:[%s5 + $0x138] sm:$0xff]
      %v2690 = vld [vmem:[%s5 + $0x140] sm:$0xff]
      %v2691 = vld [vmem:[%s5 + $0x148] sm:$0xff]
      %v2692 = vld [vmem:[%s5 + $0x150] sm:$0xff]
      %v2693 = vld [vmem:[%s5 + $0x158] sm:$0xff]
      %v2694 = vld [vmem:[%s5 + $0x160] sm:$0xff]
      %v2695 = vld [vmem:[%s5 + $0x168] sm:$0xff]
      %v2696 = vld [vmem:[%s5 + $0x170] sm:$0xff]
      %v2697 = vld [vmem:[%s5 + $0x178] sm:$0xff]
      %v2698 = vld [vmem:[%s5 + $0x180] sm:$0xff]
      %v2699 = vld [vmem:[%s5 + $0x188] sm:$0xff]
      %v2700 = vld [vmem:[%s5 + $0x190] sm:$0xff]
      %v2701 = vld [vmem:[%s5 + $0x198] sm:$0xff]
      %v2702 = vld [vmem:[%s5 + $0x1a0] sm:$0xff]
      %v2703 = vld [vmem:[%s5 + $0x1a8] sm:$0xff]
      %v2704 = vld [vmem:[%s5 + $0x1b0] sm:$0xff]
      %v2705 = vld [vmem:[%s5 + $0x1b8] sm:$0xff]
      %v2706 = vld [vmem:[%s5 + $0x1c0] sm:$0xff]
      %v2707 = vld [vmem:[%s5 + $0x1c8] sm:$0xff]
      %v2708 = vld [vmem:[%s5 + $0x1d0] sm:$0xff]
      %v2709 = vld [vmem:[%s5 + $0x1d8] sm:$0xff]
      %v2710 = vld [vmem:[%s5 + $0x1e0] sm:$0xff]
      %v2711 = vld [vmem:[%s5 + $0x1e8] sm:$0xff]
      %v2712 = vld [vmem:[%s5 + $0x1f0] sm:$0xff]
      %v2713 = vld [vmem:[%s5 + $0x1f8] sm:$0xff]
      %v2714 = vld [vmem:[%s6] sm:$0x3]
      %v2716 = vlaneseq
      %v2717 = vshrl.u32 %v2716, 7
      %v2718 = vsub.s32 0, %v2717
      %v2719 = vrot.slane %v2714, %v2718
      %v2720 = vlaneseq
      %v2721 = vshrl.u32 %v2720, 7
      %v2722 = vsub.s32 1, %v2721
      %v2723 = vrot.slane %v2714, %v2722
      %v2790 = vunpack.c.l.b16 %v2650
      %v2791 = vunpack.c.h.b16 %v2650
      %v2792 = vunpack.c.l.b16 %v2651
      %v2793 = vunpack.c.h.b16 %v2651
      %v2794 = vunpack.c.l.b16 %v2652
      %v2795 = vunpack.c.h.b16 %v2652
      %v2796 = vunpack.c.l.b16 %v2653
      %v2797 = vunpack.c.h.b16 %v2653
      %v2798 = vunpack.c.l.b16 %v2654
      %v2799 = vunpack.c.h.b16 %v2654
      %v2800 = vunpack.c.l.b16 %v2655
      %v2801 = vunpack.c.h.b16 %v2655
      %v2802 = vunpack.c.l.b16 %v2656
      %v2803 = vunpack.c.h.b16 %v2656
      %v2804 = vunpack.c.l.b16 %v2657
      %v2805 = vunpack.c.h.b16 %v2657
      %v2806 = vunpack.c.l.b16 %v2658
      %v2807 = vunpack.c.h.b16 %v2658
      %v2808 = vunpack.c.l.b16 %v2659
      %v2809 = vunpack.c.h.b16 %v2659
      %v2810 = vunpack.c.l.b16 %v2660
      %v2811 = vunpack.c.h.b16 %v2660
      %v2812 = vunpack.c.l.b16 %v2661
      %v2813 = vunpack.c.h.b16 %v2661
      %v2814 = vunpack.c.l.b16 %v2662
      %v2815 = vunpack.c.h.b16 %v2662
      %v2816 = vunpack.c.l.b16 %v2663
      %v2817 = vunpack.c.h.b16 %v2663
      %v2818 = vunpack.c.l.b16 %v2664
      %v2819 = vunpack.c.h.b16 %v2664
      %v2820 = vunpack.c.l.b16 %v2665
      %v2821 = vunpack.c.h.b16 %v2665
      %v2822 = vunpack.c.l.b16 %v2666
      %v2823 = vunpack.c.h.b16 %v2666
      %v2824 = vunpack.c.l.b16 %v2667
      %v2825 = vunpack.c.h.b16 %v2667
      %v2826 = vunpack.c.l.b16 %v2668
      %v2827 = vunpack.c.h.b16 %v2668
      %v2828 = vunpack.c.l.b16 %v2669
      %v2829 = vunpack.c.h.b16 %v2669
      %v2830 = vunpack.c.l.b16 %v2670
      %v2831 = vunpack.c.h.b16 %v2670
      %v2832 = vunpack.c.l.b16 %v2671
      %v2833 = vunpack.c.h.b16 %v2671
      %v2834 = vunpack.c.l.b16 %v2672
      %v2835 = vunpack.c.h.b16 %v2672
      %v2836 = vunpack.c.l.b16 %v2673
      %v2837 = vunpack.c.h.b16 %v2673
      %v2838 = vunpack.c.l.b16 %v2674
      %v2839 = vunpack.c.h.b16 %v2674
      %v2840 = vunpack.c.l.b16 %v2675
      %v2841 = vunpack.c.h.b16 %v2675
      %v2842 = vunpack.c.l.b16 %v2676
      %v2843 = vunpack.c.h.b16 %v2676
      %v2844 = vunpack.c.l.b16 %v2677
      %v2845 = vunpack.c.h.b16 %v2677
      %v2846 = vunpack.c.l.b16 %v2678
      %v2847 = vunpack.c.h.b16 %v2678
      %v2848 = vunpack.c.l.b16 %v2679
      %v2849 = vunpack.c.h.b16 %v2679
      %v2850 = vunpack.c.l.b16 %v2680
      %v2851 = vunpack.c.h.b16 %v2680
      %v2852 = vunpack.c.l.b16 %v2681
      %v2853 = vunpack.c.h.b16 %v2681
      %v2854 = vunpack.c.l.b16 %v2682
      %v2855 = vunpack.c.h.b16 %v2682
      %v2856 = vunpack.c.l.b16 %v2683
      %v2857 = vunpack.c.h.b16 %v2683
      %v2858 = vunpack.c.l.b16 %v2684
      %v2859 = vunpack.c.h.b16 %v2684
      %v2860 = vunpack.c.l.b16 %v2685
      %v2861 = vunpack.c.h.b16 %v2685
      %v2862 = vunpack.c.l.b16 %v2686
      %v2863 = vunpack.c.h.b16 %v2686
      %v2864 = vunpack.c.l.b16 %v2687
      %v2865 = vunpack.c.h.b16 %v2687
      %v2866 = vunpack.c.l.b16 %v2688
      %v2867 = vunpack.c.h.b16 %v2688
      %v2868 = vunpack.c.l.b16 %v2689
      %v2869 = vunpack.c.h.b16 %v2689
      %v2870 = vunpack.c.l.b16 %v2690
      %v2871 = vunpack.c.h.b16 %v2690
      %v2872 = vunpack.c.l.b16 %v2691
      %v2873 = vunpack.c.h.b16 %v2691
      %v2874 = vunpack.c.l.b16 %v2692
      %v2875 = vunpack.c.h.b16 %v2692
      %v2876 = vunpack.c.l.b16 %v2693
      %v2877 = vunpack.c.h.b16 %v2693
      %v2878 = vunpack.c.l.b16 %v2694
      %v2879 = vunpack.c.h.b16 %v2694
      %v2880 = vunpack.c.l.b16 %v2695
      %v2881 = vunpack.c.h.b16 %v2695
      %v2882 = vunpack.c.l.b16 %v2696
      %v2883 = vunpack.c.h.b16 %v2696
      %v2884 = vunpack.c.l.b16 %v2697
      %v2885 = vunpack.c.h.b16 %v2697
      %v2886 = vunpack.c.l.b16 %v2698
      %v2887 = vunpack.c.h.b16 %v2698
      %v2888 = vunpack.c.l.b16 %v2699
      %v2889 = vunpack.c.h.b16 %v2699
      %v2890 = vunpack.c.l.b16 %v2700
      %v2891 = vunpack.c.h.b16 %v2700
      %v2892 = vunpack.c.l.b16 %v2701
      %v2893 = vunpack.c.h.b16 %v2701
      %v2894 = vunpack.c.l.b16 %v2702
      %v2895 = vunpack.c.h.b16 %v2702
      %v2896 = vunpack.c.l.b16 %v2703
      %v2897 = vunpack.c.h.b16 %v2703
      %v2898 = vunpack.c.l.b16 %v2704
      %v2899 = vunpack.c.h.b16 %v2704
      %v2900 = vunpack.c.l.b16 %v2705
      %v2901 = vunpack.c.h.b16 %v2705
      %v2902 = vunpack.c.l.b16 %v2706
      %v2903 = vunpack.c.h.b16 %v2706
      %v2904 = vunpack.c.l.b16 %v2707
      %v2905 = vunpack.c.h.b16 %v2707
      %v2906 = vunpack.c.l.b16 %v2708
      %v2907 = vunpack.c.h.b16 %v2708
      %v2908 = vunpack.c.l.b16 %v2709
      %v2909 = vunpack.c.h.b16 %v2709
      %v2910 = vunpack.c.l.b16 %v2710
      %v2911 = vunpack.c.h.b16 %v2710
      %v2912 = vunpack.c.l.b16 %v2711
      %v2913 = vunpack.c.h.b16 %v2711
      %v2914 = vunpack.c.l.b16 %v2712
      %v2915 = vunpack.c.h.b16 %v2712
      %v2916 = vunpack.c.l.b16 %v2713
      %v2917 = vunpack.c.h.b16 %v2713
      %v2918 = vpack.c.b16 %v2792, %v2790
      %v2919 = vpack.c.b16 %v2793, %v2791
      %v2920 = vpack.c.b16 %v2796, %v2794
      %v2921 = vpack.c.b16 %v2797, %v2795
      %v2922 = vpack.c.b16 %v2800, %v2798
      %v2923 = vpack.c.b16 %v2801, %v2799
      %v2924 = vpack.c.b16 %v2804, %v2802
      %v2925 = vpack.c.b16 %v2805, %v2803
      %v2926 = vpack.c.b16 %v2808, %v2806
      %v2927 = vpack.c.b16 %v2809, %v2807
      %v2928 = vpack.c.b16 %v2812, %v2810
      %v2929 = vpack.c.b16 %v2813, %v2811
      %v2930 = vpack.c.b16 %v2816, %v2814
      %v2931 = vpack.c.b16 %v2817, %v2815
      %v2932 = vpack.c.b16 %v2820, %v2818
      %v2933 = vpack.c.b16 %v2821, %v2819
      %v2934 = vpack.c.b16 %v2824, %v2822
      %v2935 = vpack.c.b16 %v2825, %v2823
      %v2936 = vpack.c.b16 %v2828, %v2826
      %v2937 = vpack.c.b16 %v2829, %v2827
      %v2938 = vpack.c.b16 %v2832, %v2830
      %v2939 = vpack.c.b16 %v2833, %v2831
      %v2940 = vpack.c.b16 %v2836, %v2834
      %v2941 = vpack.c.b16 %v2837, %v2835
      %v2942 = vpack.c.b16 %v2840, %v2838
      %v2943 = vpack.c.b16 %v2841, %v2839
      %v2944 = vpack.c.b16 %v2844, %v2842
      %v2945 = vpack.c.b16 %v2845, %v2843
      %v2946 = vpack.c.b16 %v2848, %v2846
      %v2947 = vpack.c.b16 %v2849, %v2847
      %v2948 = vpack.c.b16 %v2852, %v2850
      %v2949 = vpack.c.b16 %v2853, %v2851
      %v2950 = vpack.c.b16 %v2856, %v2854
      %v2951 = vpack.c.b16 %v2857, %v2855
      %v2952 = vpack.c.b16 %v2860, %v2858
      %v2953 = vpack.c.b16 %v2861, %v2859
      %v2954 = vpack.c.b16 %v2864, %v2862
      %v2955 = vpack.c.b16 %v2865, %v2863
      %v2956 = vpack.c.b16 %v2868, %v2866
      %v2957 = vpack.c.b16 %v2869, %v2867
      %v2958 = vpack.c.b16 %v2872, %v2870
      %v2959 = vpack.c.b16 %v2873, %v2871
      %v2960 = vpack.c.b16 %v2876, %v2874
      %v2961 = vpack.c.b16 %v2877, %v2875
      %v2962 = vpack.c.b16 %v2880, %v2878
      %v2963 = vpack.c.b16 %v2881, %v2879
      %v2964 = vpack.c.b16 %v2884, %v2882
      %v2965 = vpack.c.b16 %v2885, %v2883
      %v2966 = vpack.c.b16 %v2888, %v2886
      %v2967 = vpack.c.b16 %v2889, %v2887
      %v2968 = vpack.c.b16 %v2892, %v2890
      %v2969 = vpack.c.b16 %v2893, %v2891
      %v2970 = vpack.c.b16 %v2896, %v2894
      %v2971 = vpack.c.b16 %v2897, %v2895
      %v2972 = vpack.c.b16 %v2900, %v2898
      %v2973 = vpack.c.b16 %v2901, %v2899
      %v2974 = vpack.c.b16 %v2904, %v2902
      %v2975 = vpack.c.b16 %v2905, %v2903
      %v2976 = vpack.c.b16 %v2908, %v2906
      %v2977 = vpack.c.b16 %v2909, %v2907
      %v2978 = vpack.c.b16 %v2912, %v2910
      %v2979 = vpack.c.b16 %v2913, %v2911
      %v2980 = vpack.c.b16 %v2916, %v2914
      %v2981 = vpack.c.b16 %v2917, %v2915
      %3046 = vmatprep.subr.bf16.mxu0 %v2919
      %3047 = vmatpush1.bf16.msra.mxu0 %v2918
      %3048 = vmatprep.subr.bf16.mxu0 %v2921
      %3049 = vmatpush1.bf16.msra.mxu0 %v2920
      %3050 = vmatprep.subr.bf16.mxu0 %v2923
      %3051 = vmatpush1.bf16.msra.mxu0 %v2922
      %3052 = vmatprep.subr.bf16.mxu0 %v2925
      %3053 = vmatpush1.bf16.msra.mxu0 %v2924
      %3054 = vmatprep.subr.bf16.mxu0 %v2927
      %3055 = vmatpush1.bf16.msra.mxu0 %v2926
      %3056 = vmatprep.subr.bf16.mxu0 %v2929
      %3057 = vmatpush1.bf16.msra.mxu0 %v2928
      %3058 = vmatprep.subr.bf16.mxu0 %v2931
      %3059 = vmatpush1.bf16.msra.mxu0 %v2930
      %3060 = vmatprep.subr.bf16.mxu0 %v2933
      %3061 = vmatpush1.bf16.msra.mxu0 %v2932
      %3062 = vmatprep.subr.bf16.mxu0 %v2935
      %3063 = vmatpush1.bf16.msra.mxu0 %v2934
      %3064 = vmatprep.subr.bf16.mxu0 %v2937
      %3065 = vmatpush1.bf16.msra.mxu0 %v2936
      %3066 = vmatprep.subr.bf16.mxu0 %v2939
      %3067 = vmatpush1.bf16.msra.mxu0 %v2938
      %3068 = vmatprep.subr.bf16.mxu0 %v2941
      %3069 = vmatpush1.bf16.msra.mxu0 %v2940
      %3070 = vmatprep.subr.bf16.mxu0 %v2943
      %3071 = vmatpush1.bf16.msra.mxu0 %v2942
      %3072 = vmatprep.subr.bf16.mxu0 %v2945
      %3073 = vmatpush1.bf16.msra.mxu0 %v2944
      %3074 = vmatprep.subr.bf16.mxu0 %v2947
      %3075 = vmatpush1.bf16.msra.mxu0 %v2946
      %3076 = vmatprep.subr.bf16.mxu0 %v2949
      %3077 = vmatpush1.bf16.msra.mxu0 %v2948
      %3078 = vmatprep.mubr.bf16.mxu0 %v2647
      %3079 = vmatmul.mubr.bf16.gmra.mrb[0].mxu0 %v2646
      %v3080 = vpop.f32.mrb[0].mxu0
      %v3081 = vadd.f32 %v2719, %v3080
      %v3082 = vpop.f32.mrb[0].mxu0
      %v3083 = vadd.f32 %v2723, %v3082
      %v3084 = vpop.f32.mrb[0].mxu0
      %v3085 = vadd.f32 %v2719, %v3084
      %v3086 = vpop.f32.mrb[0].mxu0
      %v3087 = vadd.f32 %v2723, %v3086
      %3088 = vdwg.mxu0
      %3089 = vmatprep.subr.bf16.mxu0 %v2951
      %3090 = vmatpush1.bf16.msra.mxu0 %v2950
      %3091 = vmatprep.subr.bf16.mxu0 %v2953
      %3092 = vmatpush1.bf16.msra.mxu0 %v2952
      %3093 = vmatprep.subr.bf16.mxu0 %v2955
      %3094 = vmatpush1.bf16.msra.mxu0 %v2954
      %3095 = vmatprep.subr.bf16.mxu0 %v2957
      %3096 = vmatpush1.bf16.msra.mxu0 %v2956
      %3097 = vmatprep.subr.bf16.mxu0 %v2959
      %3098 = vmatpush1.bf16.msra.mxu0 %v2958
      %3099 = vmatprep.subr.bf16.mxu0 %v2961
      %3100 = vmatpush1.bf16.msra.mxu0 %v2960
      %3101 = vmatprep.subr.bf16.mxu0 %v2963
      %3102 = vmatpush1.bf16.msra.mxu0 %v2962
      %3103 = vmatprep.subr.bf16.mxu0 %v2965
      %3104 = vmatpush1.bf16.msra.mxu0 %v2964
      %3105 = vmatprep.subr.bf16.mxu0 %v2967
      %3106 = vmatpush1.bf16.msra.mxu0 %v2966
      %3107 = vmatprep.subr.bf16.mxu0 %v2969
      %3108 = vmatpush1.bf16.msra.mxu0 %v2968
      %3109 = vmatprep.subr.bf16.mxu0 %v2971
      %3110 = vmatpush1.bf16.msra.mxu0 %v2970
      %3111 = vmatprep.subr.bf16.mxu0 %v2973
      %3112 = vmatpush1.bf16.msra.mxu0 %v2972
      %3113 = vmatprep.subr.bf16.mxu0 %v2975
      %3114 = vmatpush1.bf16.msra.mxu0 %v2974
      %3115 = vmatprep.subr.bf16.mxu0 %v2977
      %3116 = vmatpush1.bf16.msra.mxu0 %v2976
      %3117 = vmatprep.subr.bf16.mxu0 %v2979
      %3118 = vmatpush1.bf16.msra.mxu0 %v2978
      %3119 = vmatprep.subr.bf16.mxu0 %v2981
      %3120 = vmatpush1.bf16.msra.mxu0 %v2980
      %3121 = vmatprep.mubr.bf16.mxu0 %v2649
      %3122 = vmatmul.mubr.bf16.gmra.mrb[0].mxu0 %v2648
      %v3123 = vpop.f32.mrb[0].mxu0
      %v3124 = vadd.f32 %v3081, %v3123
      %v3125 = vpop.f32.mrb[0].mxu0
      %v3126 = vadd.f32 %v3083, %v3125
      %v3127 = vpop.f32.mrb[0].mxu0
      %v3128 = vadd.f32 %v3085, %v3127
      %v3129 = vpop.f32.mrb[0].mxu0
      %v3130 = vadd.f32 %v3087, %v3129
      %3131 = vdwg.mxu0
      %v3132 = vtanh.pop %v3124
      %v3133 = vtanh.pop %v3126
      %v3134 = vtanh.pop %v3128
      %v3135 = vtanh.pop %v3130
      %v3136 = vpack.c.bf16 %v3134, %v3132
      %v3137 = vpack.c.bf16 %v3135, %v3133
      %v3138 = vld [vmem:[%s7] sm:$0xf]
      %v3139 = vld [vmem:[%s7 + $0x4] sm:$0xf]
      %v3140 = vld [vmem:[%s7 + $0x8] sm:$0xf]
      %v3141 = vld [vmem:[%s7 + $0xc] sm:$0xf]
      %v3142 = vld [vmem:[%s7 + $0x10] sm:$0xf]
      %v3143 = vld [vmem:[%s7 + $0x14] sm:$0xf]
      %v3144 = vld [vmem:[%s7 + $0x18] sm:$0xf]
      %v3145 = vld [vmem:[%s7 + $0x1c] sm:$0xf]
      %v3146 = vld [vmem:[%s7 + $0x20] sm:$0xf]
      %v3147 = vld [vmem:[%s7 + $0x24] sm:$0xf]
      %v3148 = vld [vmem:[%s7 + $0x28] sm:$0xf]
      %v3149 = vld [vmem:[%s7 + $0x2c] sm:$0xf]
      %v3150 = vld [vmem:[%s7 + $0x30] sm:$0xf]
      %v3151 = vld [vmem:[%s7 + $0x34] sm:$0xf]
      %v3152 = vld [vmem:[%s7 + $0x38] sm:$0xf]
      %v3153 = vld [vmem:[%s7 + $0x3c] sm:$0xf]
      %v3154 = vld [vmem:[%s7 + $0x40] sm:$0xf]
      %v3155 = vld [vmem:[%s7 + $0x44] sm:$0xf]
      %v3156 = vld [vmem:[%s7 + $0x48] sm:$0xf]
      %v3157 = vld [vmem:[%s7 + $0x4c] sm:$0xf]
      %v3158 = vld [vmem:[%s7 + $0x50] sm:$0xf]
      %v3159 = vld [vmem:[%s7 + $0x54] sm:$0xf]
      %v3160 = vld [vmem:[%s7 + $0x58] sm:$0xf]
      %v3161 = vld [vmem:[%s7 + $0x5c] sm:$0xf]
      %v3162 = vld [vmem:[%s7 + $0x60] sm:$0xf]
      %v3163 = vld [vmem:[%s7 + $0x64] sm:$0xf]
      %v3164 = vld [vmem:[%s7 + $0x68] sm:$0xf]
      %v3165 = vld [vmem:[%s7 + $0x6c] sm:$0xf]
      %v3166 = vld [vmem:[%s7 + $0x70] sm:$0xf]
      %v3167 = vld [vmem:[%s7 + $0x74] sm:$0xf]
      %v3168 = vld [vmem:[%s7 + $0x78] sm:$0xf]
      %v3169 = vld [vmem:[%s7 + $0x7c] sm:$0xf]
      %v3170 = vld [vmem:[%s8] sm:$0x1]
      %v3172 = vlaneseq
      %v3173 = vshrl.u32 %v3172, 7
      %v3174 = vsub.s32 0, %v3173
      %v3175 = vrot.slane %v3170, %v3174
      %v3209 = vunpack.c.l.b16 %v3138
      %v3210 = vunpack.c.l.b16 %v3139
      %v3211 = vunpack.c.l.b16 %v3140
      %v3212 = vunpack.c.l.b16 %v3141
      %v3213 = vunpack.c.l.b16 %v3142
      %v3214 = vunpack.c.l.b16 %v3143
      %v3215 = vunpack.c.l.b16 %v3144
      %v3216 = vunpack.c.l.b16 %v3145
      %v3217 = vunpack.c.l.b16 %v3146
      %v3218 = vunpack.c.l.b16 %v3147
      %v3219 = vunpack.c.l.b16 %v3148
      %v3220 = vunpack.c.l.b16 %v3149
      %v3221 = vunpack.c.l.b16 %v3150
      %v3222 = vunpack.c.l.b16 %v3151
      %v3223 = vunpack.c.l.b16 %v3152
      %v3224 = vunpack.c.l.b16 %v3153
      %v3225 = vunpack.c.l.b16 %v3154
      %v3226 = vunpack.c.l.b16 %v3155
      %v3227 = vunpack.c.l.b16 %v3156
      %v3228 = vunpack.c.l.b16 %v3157
      %v3229 = vunpack.c.l.b16 %v3158
      %v3230 = vunpack.c.l.b16 %v3159
      %v3231 = vunpack.c.l.b16 %v3160
      %v3232 = vunpack.c.l.b16 %v3161
      %v3233 = vunpack.c.l.b16 %v3162
      %v3234 = vunpack.c.l.b16 %v3163
      %v3235 = vunpack.c.l.b16 %v3164
      %v3236 = vunpack.c.l.b16 %v3165
      %v3237 = vunpack.c.l.b16 %v3166
      %v3238 = vunpack.c.l.b16 %v3167
      %v3239 = vunpack.c.l.b16 %v3168
      %v3240 = vunpack.c.l.b16 %v3169
      %v3241 = vpack.c.b16 %v3210, %v3209
      %v3242 = vpack.c.b16 %v3212, %v3211
      %v3243 = vpack.c.b16 %v3214, %v3213
      %v3244 = vpack.c.b16 %v3216, %v3215
      %v3245 = vpack.c.b16 %v3218, %v3217
      %v3246 = vpack.c.b16 %v3220, %v3219
      %v3247 = vpack.c.b16 %v3222, %v3221
      %v3248 = vpack.c.b16 %v3224, %v3223
      %v3249 = vpack.c.b16 %v3226, %v3225
      %v3250 = vpack.c.b16 %v3228, %v3227
      %v3251 = vpack.c.b16 %v3230, %v3229
      %v3252 = vpack.c.b16 %v3232, %v3231
      %v3253 = vpack.c.b16 %v3234, %v3233
      %v3254 = vpack.c.b16 %v3236, %v3235
      %v3255 = vpack.c.b16 %v3238, %v3237
      %v3256 = vpack.c.b16 %v3240, %v3239
      %3273 = vmatprep.subr.bf16.mxu0 0
      %3274 = vmatpush1.bf16.msra.mxu0 %v3241
      %3275 = vmatprep.subr.bf16.mxu0 0
      %3276 = vmatpush1.bf16.msra.mxu0 %v3242
      %3277 = vmatprep.subr.bf16.mxu0 0
      %3278 = vmatpush1.bf16.msra.mxu0 %v3243
      %3279 = vmatprep.subr.bf16.mxu0 0
      %3280 = vmatpush1.bf16.msra.mxu0 %v3244
      %3281 = vmatprep.subr.bf16.mxu0 0
      %3282 = vmatpush1.bf16.msra.mxu0 %v3245
      %3283 = vmatprep.subr.bf16.mxu0 0
      %3284 = vmatpush1.bf16.msra.mxu0 %v3246
      %3285 = vmatprep.subr.bf16.mxu0 0
      %3286 = vmatpush1.bf16.msra.mxu0 %v3247
      %3287 = vmatprep.subr.bf16.mxu0 0
      %3288 = vmatpush1.bf16.msra.mxu0 %v3248
      %3289 = vmatprep.subr.bf16.mxu0 0
      %3290 = vmatpush1.bf16.msra.mxu0 %v3249
      %3291 = vmatprep.subr.bf16.mxu0 0
      %3292 = vmatpush1.bf16.msra.mxu0 %v3250
      %3293 = vmatprep.subr.bf16.mxu0 0
      %3294 = vmatpush1.bf16.msra.mxu0 %v3251
      %3295 = vmatprep.subr.bf16.mxu0 0
      %3296 = vmatpush1.bf16.msra.mxu0 %v3252
      %3297 = vmatprep.subr.bf16.mxu0 0
      %3298 = vmatpush1.bf16.msra.mxu0 %v3253
      %3299 = vmatprep.subr.bf16.mxu0 0
      %3300 = vmatpush1.bf16.msra.mxu0 %v3254
      %3301 = vmatprep.subr.bf16.mxu0 0
      %3302 = vmatpush1.bf16.msra.mxu0 %v3255
      %3303 = vmatprep.subr.bf16.mxu0 0
      %3304 = vmatpush1.bf16.msra.mxu0 %v3256
      %3305 = vmatprep.mubr.bf16.mxu0 %v3137
      %3306 = vmatmul.mubr.bf16.gmra.mrb[0].mxu0 %v3136
      %v3307 = vpop.f32.mrb[0].mxu0
      %v3308 = vadd.f32 %v3175, %v3307
      %v3309 = vpop.f32.mrb[0].mxu0
      %v3310 = vpop.f32.mrb[0].mxu0
      %v3311 = vadd.f32 %v3175, %v3310
      %v3312 = vpop.f32.mrb[0].mxu0
      %3313 = vdwg.mxu0
      %v3314 = vtanh.pop %v3308
      %v3315 = vtanh.pop %v3311
      %v3316 = vpack.c.bf16 %v3315, %v3314
      %v3317 = vld [vmem:[%s9] sm:$0xf]
      %v3318 = vld [vmem:[%s9 + $0x4] sm:$0xf]
      %v3319 = vld [vmem:[%s9 + $0x8] sm:$0xf]
      %v3320 = vld [vmem:[%s9 + $0xc] sm:$0xf]
      %v3321 = vld [vmem:[%s9 + $0x10] sm:$0xf]
      %v3322 = vld [vmem:[%s9 + $0x14] sm:$0xf]
      %v3323 = vld [vmem:[%s9 + $0x18] sm:$0xf]
      %v3324 = vld [vmem:[%s9 + $0x1c] sm:$0xf]
      %v3325 = vld [vmem:[%s10] sm:$0x1]
      %v3327 = vlaneseq
      %v3328 = vshrl.u32 %v3327, 7
      %v3329 = vsub.s32 0, %v3328
      %v3330 = vrot.slane %v3325, %v3329
      %v3340 = vunpack.c.l.b16 %v3317
      %v3341 = vunpack.c.l.b16 %v3318
      %v3342 = vunpack.c.l.b16 %v3319
      %v3343 = vunpack.c.l.b16 %v3320
      %v3344 = vunpack.c.l.b16 %v3321
      %v3345 = vunpack.c.l.b16 %v3322
      %v3346 = vunpack.c.l.b16 %v3323
      %v3347 = vunpack.c.l.b16 %v3324
      %v3348 = vpack.c.b16 %v3341, %v3340
      %v3349 = vpack.c.b16 %v3343, %v3342
      %v3350 = vpack.c.b16 %v3345, %v3344
      %v3351 = vpack.c.b16 %v3347, %v3346
      %vm3356 = vcmask 523264
      %v3358 = vsel %vm3356, %v3316, 0
      %3360 = vmatprep.subr.bf16.mxu0 0
      %3361 = vmatpush1.bf16.msra.mxu0 %v3348
      %3362 = vmatprep.subr.bf16.mxu0 0
      %3363 = vmatpush1.bf16.msra.mxu0 %v3349
      %3364 = vmatprep.subr.bf16.mxu0 0
      %3365 = vmatpush1.bf16.msra.mxu0 %v3350
      %3366 = vmatprep.subr.bf16.mxu0 0
      %3367 = vmatpush1.bf16.msra.mxu0 %v3351
      %3368 = vmatprep.subr.bf16.mxu0 0
      %3369 = vmatpush1.bf16.msra.mxu0 0
      %3370 = vmatprep.subr.bf16.mxu0 0
      %3371 = vmatpush1.bf16.msra.mxu0 0
      %3372 = vmatprep.subr.bf16.mxu0 0
      %3373 = vmatpush1.bf16.msra.mxu0 0
      %3374 = vmatprep.subr.bf16.mxu0 0
      %3375 = vmatpush1.bf16.msra.mxu0 0
      %3376 = vmatprep.subr.bf16.mxu0 0
      %3377 = vmatpush1.bf16.msra.mxu0 0
      %3378 = vmatprep.subr.bf16.mxu0 0
      %3379 = vmatpush1.bf16.msra.mxu0 0
      %3380 = vmatprep.subr.bf16.mxu0 0
      %3381 = vmatpush1.bf16.msra.mxu0 0
      %3382 = vmatprep.subr.bf16.mxu0 0
      %3383 = vmatpush1.bf16.msra.mxu0 0
      %3384 = vmatprep.subr.bf16.mxu0 0
      %3385 = vmatpush1.bf16.msra.mxu0 0
      %3386 = vmatprep.subr.bf16.mxu0 0
      %3387 = vmatpush1.bf16.msra.mxu0 0
      %3388 = vmatprep.subr.bf16.mxu0 0
      %3389 = vmatpush1.bf16.msra.mxu0 0
      %3390 = vmatprep.subr.bf16.mxu0 0
      %3391 = vmatpush1.bf16.msra.mxu0 0
      %3392 = vmatprep.mubr.bf16.mxu0 0
      %3393 = vmatmul.mubr.bf16.gmra.mrb[0].mxu0 %v3358
      %v3394 = vpop.f32.mrb[0].mxu0
      %v3395 = vadd.f32 %v3330, %v3394
      %v3396 = vpop.f32.mrb[0].mxu0
      %v3397 = vpop.f32.mrb[0].mxu0
      %v3398 = vadd.f32 %v3330, %v3397
      %v3399 = vpop.f32.mrb[0].mxu0
      %3400 = vdwg.mxu0
      %v3401 = vlaneseq
      %v3402 = vand.u32 %v3401, 127
      %vm3403 = vcmp.lt.s32.totalorder %v3402, 8
      %v3404 = vsel %vm3403, %v3395, -1e+30
      %v3405 = vsel %vm3403, %v3398, -1e+30
      %3406 = vmax.xlane.f32.xlu0 %v3404
      %v3407 = vpop.xlane.xlu0 %3406
      %3408 = vmax.xlane.f32.xlu0 %v3405
      %v3409 = vpop.xlane.xlu0 %3408
      %v3410 = vsub.f32 %v3404, %v3407
      %v3411 = vsub.f32 %v3405, %v3409
      %v3412 = vmul.f32 %v3410, 1.442695
      %v3413 = vpow.pop %v3412
      %v3414 = vmul.f32 %v3411, 1.442695
      %v3415 = vpow.pop %v3414
      %3416 = vadd.xlane.f32.xlu0 %v3413
      %v3417 = vpop.xlane.xlu0 %3416
      %3418 = vadd.xlane.f32.xlu0 %v3415
      %v3419 = vpop.xlane.xlu0 %3418
      %v3420 = vrcp.pop %v3417
      %v3421 = vrcp.pop %v3419
      %v3422 = vmul.f32 %v3413, %v3420
      %v3423 = vmul.f32 %v3415, %v3421
      %v3424 = vsel %vm3403, %v3422, %v3395
      %v3425 = vsel %vm3403, %v3423, %v3398
      %3426 = vst [vmem:[%s388] sm:$0xff] %v3424
      %3427 = vst [vmem:[%s388 + $0x8] sm:$0xff] %v3425
      %s3428 = smul.u32 2, %s22
      %p3429 = scmp.lt.s32.totalorder %s3428, 7
      %s3430 = scalar_select %p3429, %s3428, 7
      %s3431 = smul.addr %s3430, 8
      %s3432 = scalar_lea.vmem %s11, %s3431
      // Predicated region
      $region65: #{ppo_actor_critic_forward.1} parent=63 // pred_check
        %p3433 = pneg %p276
      $region66: #{ppo_actor_critic_forward.1} parent=63 // pred_check_branch
        %3435 = sbr.rel (%p3433) target = $region68
      $region67: #{ppo_actor_critic_forward.1} parent=63 // pred_region
        %s3436 = smul.u32 2, %s22
      $region68: #{ppo_actor_critic_forward.1} parent=63 // pred_fallthru
        _
    $region64: #{ppo_actor_critic_forward.1} parent=5 // pred_fallthru
      _
    %p3437 = scmp.le.s32.totalorder 2, %s17
    // Predicated region
    $region69: #{ppo_actor_critic_forward.1} parent=5 // pred_check
      %p3438 = pneg %p3437
    $region70: #{ppo_actor_critic_forward.1} parent=5 // pred_check_branch
      %3440 = sbr.rel (%p3438) target = $region72
    $region71: #{ppo_actor_critic_forward.1} parent=5 // pred_region
      %s3441 = ssub.s32 %s17, 2
      // Predicated region
      $region73: #{ppo_actor_critic_forward.1} parent=71 // pred_check
        %p3442 = pneg %p282
      $region74: #{ppo_actor_critic_forward.1} parent=71 // pred_check_branch
        %3444 = sbr.rel (%p3442) target = $region76
      $region75: #{ppo_actor_critic_forward.1} parent=71 // pred_region
        %s3445 = smul.u32 2, %s23
        %p3446 = scmp.lt.s32.totalorder %s3445, 7
        %s3447 = scalar_select %p3446, %s3445, 7
        %s3448 = smul.addr %s3447, 8
        %s3449 = scalar_lea.vmem %s11, %s3448
      $region76: #{ppo_actor_critic_forward.1} parent=71 // pred_fallthru
        _
    $region72: #{ppo_actor_critic_forward.1} parent=5 // pred_fallthru
      _
  $region6: #{ppo_actor_critic_forward.1} parent=0 // loop_footer
    %s21 = sadd.s32 1, %s17
  $region7: #{ppo_actor_critic_forward.1} parent=0 // loop_footer_branch
    %16 = sbr.rel target = $region3
  $region8: #{ppo_actor_critic_forward.1} parent=0 // loop_exit
    _

</llo_original>
